<compile_context>
chip_gen: v5e
topology: v5e:2x2
jax: 0.10.0
libtpu: 0.0.40
codegen_flags: <defaults>
</compile_context>

<pallas_src>
import jax
import jax.numpy as jnp
from jax import lax
from jax.experimental import pallas as pl
from jax.experimental.pallas import tpu as pltpu


# ------------------------- up-conv (transposed conv) ----------------------- #

def _up_matmul_kernel(a_ref, w_ref, b_ref, o_ref):
    # bf16 MXU operands, fp32 accumulation, bf16 writeback.
    acc = jnp.dot(a_ref[...], w_ref[...], preferred_element_type=jnp.float32)
    o_ref[...] = (acc + b_ref[...]).astype(o_ref.dtype)


def _pick_tm(m_rows):
    # Aim for ~8 grid steps (pipelining + megacore sharding), sublane-aligned.
    if m_rows <= 8:
        return m_rows
    tm = -(-m_rows // 8)
    tm = -(-tm // 8) * 8
    return max(8, min(tm, 2048, m_rows))


def up_matmul(a_bf16, w_bf16, bias_f32):
    """(M, K) bf16 @ (K, Nn) bf16 + bias -> (M, Nn) bf16."""
    M, K = a_bf16.shape
    Nn = w_bf16.shape[1]
    tm = _pick_tm(M)
    return pl.pallas_call(
        _up_matmul_kernel,
        out_shape=jax.ShapeDtypeStruct((M, Nn), jnp.bfloat16),
        grid=(pl.cdiv(M, tm),),
        in_specs=[pl.BlockSpec((tm, K), lambda i: (i, 0)),
                  pl.BlockSpec((K, Nn), lambda i: (0, 0)),
                  pl.BlockSpec((1, Nn), lambda i: (0, 0))],
        out_specs=pl.BlockSpec((tm, Nn), lambda i: (i, 0)),
        compiler_params=pltpu.CompilerParams(
            dimension_semantics=("parallel",)),
    )(a_bf16, w_bf16, bias_f32)


# ----------------------- fused CplxDoubleConv kernel ----------------------- #

def double_conv(xflat, w1b, b1t, g1t, be1t, w2b, b2t, g2t, be2t, pmat,
                *, N, Ht, Wt, P):
    """Fused (conv3x3 + bias + BN(batch stats) + CReLU) x 2, lane-dense.

    xflat : (R, Wt*CA) bf16, R = P + N*(Ht+P): each spatial row flattened into
            the lane axis, P zero halo rows before the first sample and after
            every sample (P=8 keeps interior row starts sublane-aligned).
    w{1,2}b : (3, Wt*Cin, Wt*C1) bf16 banded weights (dx taps + W-boundary
              zeros folded in).  b/g/be tiled to (1, Wt*C1) f32.
    pmat  : (Wt*C1, Wt*C1) 0/1 matrix projecting lane groups onto channels
            (per-channel BN sums from the lane-dense layout).
    """
    R, _ = xflat.shape
    C1W = w1b.shape[-1]                       # Wt * C1  (lane-dense row width)
    NHt = N * Ht
    cnt = float(N * Ht * Wt)                  # elements per channel
    eps = 1e-5

    def istart(n):                            # first interior row of sample n
        return P + n * (Ht + P)

    def kernel(x_ref, w1_ref, b1_ref, g1_ref, be1_ref,
               w2_ref, b2_ref, g2_ref, be2_ref, p_ref,
               o_ref, y1_ref, a2_ref):

        def conv(src_v, w_ref, b_ref, acc_ref):
            # One MXU matmul per kernel row dy (RHS pushed once, reused over
            # the whole batch), then aligned slice-accumulates per sample.
            # Zero halo rows make the H boundary contributions vanish.
            acc_ref[...] = jnp.broadcast_to(b_ref[...], acc_ref.shape)
            for dy in range(3):
                yd = jnp.dot(src_v, w_ref[dy],
                             preferred_element_type=jnp.float32)   # (R, C1W)
                for n in range(N):            # N is tiny; per-n work is just
                    s = istart(n) + dy - 1    # a (Ht, C1W) slice-add.
                    acc_ref[pl.ds(n * Ht, Ht), :] += yd[s:s + Ht, :]

        def bn_affine(v, g_ref, be_ref):
            # Per-channel batch stats via the channel-projection matmul;
            # centered second pass for the variance (no E[x^2]-E[x]^2).
            p = p_ref[...]
            mean = jnp.sum(jnp.dot(v, p, preferred_element_type=jnp.float32),
                           axis=0, keepdims=True) / cnt
            d = v - mean
            var = jnp.sum(jnp.dot(d * d, p,
                                  preferred_element_type=jnp.float32),
                          axis=0, keepdims=True) / cnt
            scale = g_ref[...] * lax.rsqrt(var + eps)
            shift = be_ref[...] - mean * scale
            return v * scale + shift

        # conv1 + bias (f32 accumulation in the small y1 scratch)
        conv(x_ref[...], w1_ref, b1_ref, y1_ref)

        # BN1 (batch stats) + CReLU -> conv2 input, re-packed with H halo (bf16)
        a1 = jnp.maximum(bn_affine(y1_ref[...], g1_ref, be1_ref), 0.0)
        a2_ref[...] = jnp.zeros(a2_ref.shape, a2_ref.dtype)
        for n in range(N):
            a2_ref[pl.ds(istart(n), Ht), :] = (
                a1[n * Ht:(n + 1) * Ht, :].astype(a2_ref.dtype))

        # conv2 + bias accumulated directly into o_ref (no y2 scratch)
        conv(a2_ref[...], w2_ref, b2_ref, o_ref)

        # BN2 (batch stats) + CReLU in place on the output block
        o_ref[...] = jnp.maximum(bn_affine(o_ref[...], g2_ref, be2_ref), 0.0)

    def _full(arr):
        nd = arr.ndim
        return pl.BlockSpec(arr.shape, lambda *_: (0,) * nd)

    args = (xflat, w1b, b1t, g1t, be1t, w2b, b2t, g2t, be2t, pmat)
    io_bytes = sum(int(a.size) * a.dtype.itemsize for a in args) + NHt * C1W * 4
    scratch_bytes = NHt * C1W * 4 + R * C1W * 2
    vmem_limit = int(min(64 << 20,
                         max(32 << 20, 2 * io_bytes + scratch_bytes + (4 << 20))))

    return pl.pallas_call(
        kernel,
        out_shape=jax.ShapeDtypeStruct((NHt, C1W), jnp.float32),
        grid=(1,),
        in_specs=[_full(a) for a in args],
        out_specs=pl.BlockSpec((NHt, C1W), lambda i: (0, 0)),
        scratch_shapes=[pltpu.VMEM((NHt, C1W), jnp.float32),   # y1 (f32 acc)
                        pltpu.VMEM((R, C1W), jnp.bfloat16)],   # conv2 input
        compiler_params=pltpu.CompilerParams(
            dimension_semantics=("arbitrary",),
            vmem_limit_bytes=vmem_limit),
    )(*args)


# ------------------------------- model glue -------------------------------- #

def make_complex_conv_block(wr, wi):
    """(3,3,Cin,Cout) real/imag weights -> (3,3,2Cin,2Cout) block weight."""
    top = jnp.concatenate([wr, wi], axis=-1)      # multiplies x_real
    bot = jnp.concatenate([-wi, wr], axis=-1)     # multiplies x_imag
    return jnp.concatenate([top, bot], axis=-2)


def make_band_weight(w_hwio, Wt):
    """(3,3,Ci,Co) -> (3, Wt*Ci, Wt*Co) banded RHS for the lane-dense conv.

    band[dy, wi*Ci+ci, wo*Co+co] = w[dy, wi-wo+1, ci, co] for valid dx,
    else 0 (this also implements the W-boundary zero padding)."""
    wi = jnp.arange(Wt)[:, None]
    wo = jnp.arange(Wt)[None, :]
    dx = wi - wo + 1
    valid = (dx >= 0) & (dx <= 2)
    wg = w_hwio[:, jnp.clip(dx, 0, 2), :, :]              # (3, Wt, Wt, Ci, Co)
    wg = jnp.where(valid[None, :, :, None, None], wg, 0.0)
    Ci, Co = w_hwio.shape[2], w_hwio.shape[3]
    return jnp.transpose(wg, (0, 1, 3, 2, 4)).reshape(3, Wt * Ci, Wt * Co)


def pack_rows_with_h_halo(x_nhwc, P):
    """(N,H,W,C) -> (P + N*(H+P), W*C): rows flattened into lanes, P zero
    halo rows before the first sample and after each sample."""
    N, H, W, C = x_nhwc.shape
    rows = x_nhwc.reshape(N, H, W * C)
    rows = jnp.pad(rows, ((0, 0), (0, P), (0, 0)))
    flat = rows.reshape(N * (H + P), W * C)
    return jnp.pad(flat, ((P, 0), (0, 0)))


def _pad_or_crop(a, axis, before, after):
    """Like F.pad: negative amounts crop (handles x2 smaller than 2*x1)."""
    if before < 0:
        a = lax.slice_in_dim(a, -before, a.shape[axis], axis=axis)
        before = 0
    if after < 0:
        a = lax.slice_in_dim(a, 0, a.shape[axis] + after, axis=axis)
        after = 0
    if before or after:
        pad = [(0, 0)] * a.ndim
        pad[axis] = (before, after)
        a = jnp.pad(a, pad)
    return a


def cplx_up_forward(x1, x2, params, out_channels):
    """x1: (N, Cin, H, W) complex64 ; x2: (N, Cin//2, Ht, Wt) complex64."""
    N, Cin, H, W = x1.shape
    Chalf = Cin // 2
    Cout = out_channels
    Ht, Wt = int(x2.shape[2]), int(x2.shape[3])
    CA, C1 = 2 * Cin, 2 * Cout
    P = 8                                        # H halo rows (sublane-aligned)

    def nchw_to_nhwc(z):
        return jnp.transpose(z, (0, 2, 3, 1)).astype(jnp.float32)

    # real & imag stacked along batch for the (real-weight) up-conv
    x1_ri = nchw_to_nhwc(jnp.concatenate([jnp.real(x1), jnp.imag(x1)], 0))
    x2_ri = nchw_to_nhwc(jnp.concatenate([jnp.real(x2), jnp.imag(x2)], 0))

    # --- ConvTranspose2d(Cin, Cin//2, k=2, s=2): one lane-dense bf16 matmul ---
    # G pixels folded per row via a block-diagonal weight -> output rows are
    # G*4*Chalf lanes wide (128 in the test config): full-width stores.
    w_pix = jnp.transpose(params['up_w'], (0, 2, 3, 1)).reshape(Cin, 4 * Chalf)
    b_pix = jnp.tile(params['up_b'], 4)
    M = 2 * N * H * W
    G = 8 if M % 8 == 0 else 1
    eye_g = jnp.eye(G, dtype=w_pix.dtype)
    w_blk = (eye_g[:, None, :, None] * w_pix[None, :, None, :]
             ).reshape(G * Cin, G * 4 * Chalf).astype(jnp.bfloat16)
    b_blk = jnp.tile(b_pix, G).reshape(1, G * 4 * Chalf).astype(jnp.float32)
    a = x1_ri.astype(jnp.bfloat16).reshape(M // G, G * Cin)
    up = up_matmul(a, w_blk, b_blk)                   # (M/G, G*4*Chalf) bf16

    # tiny XLA glue: pixel shuffle, pad/crop to x2 spatial size, concat
    up = up.reshape(2 * N, H, W, 2, 2, Chalf)
    up = jnp.transpose(up, (0, 1, 3, 2, 4, 5)).reshape(2 * N, 2 * H, 2 * W, Chalf)
    dY, dX = Ht - 2 * H, Wt - 2 * W
    up = _pad_or_crop(up, 1, dY // 2, dY - dY // 2)
    up = _pad_or_crop(up, 2, dX // 2, dX - dX // 2)

    xcat = jnp.concatenate([x2_ri.astype(jnp.bfloat16), up], axis=-1)  # [x2, up]
    xcat = jnp.concatenate([xcat[:N], xcat[N:]], axis=-1)              # [re||im]
    xflat = pack_rows_with_h_halo(xcat, P).astype(jnp.bfloat16)        # (R, Wt*CA)

    # banded bf16 weights + tiled per-channel vectors + channel projection
    w1 = make_complex_conv_block(params['w1r'], params['w1i'])
    w2 = make_complex_conv_block(params['w2r'], params['w2i'])
    w1b = make_band_weight(w1, Wt).astype(jnp.bfloat16)    # (3, Wt*CA, Wt*C1)
    w2b = make_band_weight(w2, Wt).astype(jnp.bfloat16)    # (3, Wt*C1, Wt*C1)

    tiled = lambda v: jnp.tile(v, Wt).reshape(1, Wt * C1).astype(jnp.float32)
    ch = jnp.arange(Wt * C1) % C1
    pmat = (ch[:, None] == ch[None, :]).astype(jnp.float32)

    y = double_conv(xflat, w1b, tiled(params['b1']), tiled(params['g1']),
                    tiled(params['be1']), w2b, tiled(params['b2']),
                    tiled(params['g2']), tiled(params['be2']), pmat,
                    N=N, Ht=Ht, Wt=Wt, P=P)                # (N*Ht, Wt*C1) f32

    y = y.reshape(N, Ht, Wt, C1)
    out = lax.complex(y[..., :Cout], y[..., Cout:])        # complex64
    return jnp.transpose(out, (0, 3, 1, 2))                # back to NCHW


def init_params(key, in_channels, out_channels):
    Cin, Chalf, Cout = in_channels, in_channels // 2, out_channels
    ks = jax.random.split(key, 8)
    p = {}
    p['up_w'] = 0.1 * jax.random.normal(ks[0], (Cin, Chalf, 2, 2), jnp.float32)
    p['up_b'] = 0.1 * jax.random.normal(ks[1], (Chalf,), jnp.float32)
    p['w1r'] = 0.1 * jax.random.normal(ks[2], (3, 3, Cin, Cout), jnp.float32)
    p['w1i'] = 0.1 * jax.random.normal(ks[3], (3, 3, Cin, Cout), jnp.float32)
    p['b1'] = 0.05 * jax.random.normal(ks[4], (2 * Cout,), jnp.float32)
    p['g1'] = jnp.ones((2 * Cout,), jnp.float32)
    p['be1'] = jnp.zeros((2 * Cout,), jnp.float32)
    p['w2r'] = 0.1 * jax.random.normal(ks[5], (3, 3, Cout, Cout), jnp.float32)
    p['w2i'] = 0.1 * jax.random.normal(ks[6], (3, 3, Cout, Cout), jnp.float32)
    p['b2'] = 0.05 * jax.random.normal(ks[7], (2 * Cout,), jnp.float32)
    p['g2'] = jnp.ones((2 * Cout,), jnp.float32)
    p['be2'] = jnp.zeros((2 * Cout,), jnp.float32)
    return p


if __name__ == "__main__":
    key = jax.random.PRNGKey(0)
    k1, k2, k3, k4, kp = jax.random.split(key, 5)
    N, Cin, H, W = 2, 8, 8, 8
    Cout = 4
    x1 = (jax.random.normal(k1, (N, Cin, H, W), jnp.float32)
          + 1j * jax.random.normal(k2, (N, Cin, H, W), jnp.float32)
          ).astype(jnp.complex64)
    x2 = (jax.random.normal(k3, (N, Cin // 2, 2 * H, 2 * W), jnp.float32)
          + 1j * jax.random.normal(k4, (N, Cin // 2, 2 * H, 2 * W), jnp.float32)
          ).astype(jnp.complex64)
    params = init_params(kp, Cin, Cout)

    fwd = jax.jit(cplx_up_forward, static_argnames="out_channels")
    out = jax.block_until_ready(fwd(x1, x2, params, out_channels=Cout))
    assert out.shape == (N, Cout, 2 * H, 2 * W), out.shape
    assert out.dtype == jnp.complex64, out.dtype
    assert bool(jnp.all(jnp.isfinite(jnp.real(out))))
    assert bool(jnp.all(jnp.isfinite(jnp.imag(out))))
    print("KERNEL_OK")
</pallas_src>

<mosaic_0001>
module attributes {stable_mosaic.version = 11 : i64} {
  func.func @_up_matmul_kernel(%arg0: i32, %arg1: memref<8x64xbf16, #tpu.memory_space<vmem>>, %arg2: memref<64x128xbf16, #tpu.memory_space<vmem>>, %arg3: memref<1x128xf32, #tpu.memory_space<vmem>>, %arg4: memref<8x128xbf16, #tpu.memory_space<vmem>>) attributes {dimension_semantics = [#tpu.dimension_semantics<parallel>], iteration_bounds = array<i64: 4>, scalar_prefetch = 0 : i64, scratch_operands = 0 : i64, tpu.core_type = #tpu.core_type<tc>, window_params = [{transform_indices = @transform_0, window_bounds = array<i64: 8, 64>}, {pipeline_mode = #tpu.pipeline_mode<synchronous>, transform_indices = @transform_1, window_bounds = array<i64: 64, 128>}, {pipeline_mode = #tpu.pipeline_mode<synchronous>, transform_indices = @transform_2, window_bounds = array<i64: 1, 128>}, {transform_indices = @transform_3, window_bounds = array<i64: 8, 128>}]} {
    %c0 = arith.constant 0 : index
    %c0_0 = arith.constant 0 : index
    %0 = vector.load %arg1[%c0, %c0_0] : memref<8x64xbf16, #tpu.memory_space<vmem>>, vector<8x64xbf16>
    %c0_1 = arith.constant 0 : index
    %c0_2 = arith.constant 0 : index
    %1 = vector.load %arg2[%c0_1, %c0_2] : memref<64x128xbf16, #tpu.memory_space<vmem>>, vector<64x128xbf16>
    %cst = arith.constant dense<0.000000e+00> : vector<8x128xf32>
    %2 = tpu.matmul %0, %1, %cst {dimension_numbers = #tpu.dot_dimension_numbers<[1], [0], [0], [1], [0, 0, 1, 1], [], []>} : vector<8x64xbf16>, vector<64x128xbf16>, vector<8x128xf32> -> vector<8x128xf32>
    %c0_3 = arith.constant 0 : index
    %c0_4 = arith.constant 0 : index
    %3 = vector.load %arg3[%c0_3, %c0_4] : memref<1x128xf32, #tpu.memory_space<vmem>>, vector<1x128xf32>
    %4 = vector.broadcast %3 : vector<1x128xf32> to vector<8x128xf32>
    %5 = arith.addf %2, %4 : vector<8x128xf32>
    %6 = arith.truncf %5 : vector<8x128xf32> to vector<8x128xbf16>
    %c0_5 = arith.constant 0 : index
    %c0_6 = arith.constant 0 : index
    %7 = vector.load %arg4[%c0_5, %c0_6] : memref<8x128xbf16, #tpu.memory_space<vmem>>, vector<8x128xbf16>
    tpu.vector_store %arg4[%c0_5, %c0_6], %6 {strides = array<i32>} : memref<8x128xbf16, #tpu.memory_space<vmem>>, vector<8x128xbf16>,
    return
  }
  func.func @transform_0(%arg0: i32) -> (i32, i32) {
    %c0_i32 = arith.constant 0 : i32
    %c0_i32_0 = arith.constant 0 : i32
    return %arg0, %c0_i32 : i32, i32
  }
  func.func @transform_1(%arg0: i32) -> (i32, i32) {
    %c0_i32 = arith.constant 0 : i32
    %c0_i32_0 = arith.constant 0 : i32
    %c0_i32_1 = arith.constant 0 : i32
    return %c0_i32, %c0_i32_0 : i32, i32
  }
  func.func @transform_2(%arg0: i32) -> (i32, i32) {
    %c0_i32 = arith.constant 0 : i32
    %c0_i32_0 = arith.constant 0 : i32
    %c0_i32_1 = arith.constant 0 : i32
    return %c0_i32, %c0_i32_0 : i32, i32
  }
  func.func @transform_3(%arg0: i32) -> (i32, i32) {
    %c0_i32 = arith.constant 0 : i32
    %c0_i32_0 = arith.constant 0 : i32
    return %arg0, %c0_i32 : i32, i32
  }
}

module attributes {stable_mosaic.version = 11 : i64} {
  func.func @kernel(%arg0: i32, %arg1: memref<56x256xbf16, #tpu.memory_space<vmem>>, %arg2: memref<3x256x128xbf16, #tpu.memory_space<vmem>>, %arg3: memref<1x128xf32, #tpu.memory_space<vmem>>, %arg4: memref<1x128xf32, #tpu.memory_space<vmem>>, %arg5: memref<1x128xf32, #tpu.memory_space<vmem>>, %arg6: memref<3x128x128xbf16, #tpu.memory_space<vmem>>, %arg7: memref<1x128xf32, #tpu.memory_space<vmem>>, %arg8: memref<1x128xf32, #tpu.memory_space<vmem>>, %arg9: memref<1x128xf32, #tpu.memory_space<vmem>>, %arg10: memref<128x128xf32, #tpu.memory_space<vmem>>, %arg11: memref<32x128xf32, #tpu.memory_space<vmem>>, %arg12: memref<32x128xf32, #tpu.memory_space<vmem>>, %arg13: memref<56x128xbf16, #tpu.memory_space<vmem>>) attributes {dimension_semantics = [#tpu.dimension_semantics<arbitrary>], iteration_bounds = array<i64: 1>, scalar_prefetch = 0 : i64, scratch_operands = 2 : i64, tpu.core_type = #tpu.core_type<tc>, window_params = [{pipeline_mode = #tpu.pipeline_mode<synchronous>, transform_indices = @transform_0, window_bounds = array<i64: 56, 256>}, {pipeline_mode = #tpu.pipeline_mode<synchronous>, transform_indices = @transform_1, window_bounds = array<i64: 3, 256, 128>}, {pipeline_mode = #tpu.pipeline_mode<synchronous>, transform_indices = @transform_2, window_bounds = array<i64: 1, 128>}, {pipeline_mode = #tpu.pipeline_mode<synchronous>, transform_indices = @transform_3, window_bounds = array<i64: 1, 128>}, {pipeline_mode = #tpu.pipeline_mode<synchronous>, transform_indices = @transform_4, window_bounds = array<i64: 1, 128>}, {pipeline_mode = #tpu.pipeline_mode<synchronous>, transform_indices = @transform_5, window_bounds = array<i64: 3, 128, 128>}, {pipeline_mode = #tpu.pipeline_mode<synchronous>, transform_indices = @transform_6, window_bounds = array<i64: 1, 128>}, {pipeline_mode = #tpu.pipeline_mode<synchronous>, transform_indices = @transform_7, window_bounds = array<i64: 1, 128>}, {pipeline_mode = #tpu.pipeline_mode<synchronous>, transform_indices = @transform_8, window_bounds = array<i64: 1, 128>}, {pipeline_mode = #tpu.pipeline_mode<synchronous>, transform_indices = @transform_9, window_bounds = array<i64: 128, 128>}, {pipeline_mode = #tpu.pipeline_mode<synchronous>, transform_indices = @transform_10, window_bounds = array<i64: 32, 128>}]} {
    %c0 = arith.constant 0 : index
    %c0_0 = arith.constant 0 : index
    %0 = vector.load %arg1[%c0, %c0_0] : memref<56x256xbf16, #tpu.memory_space<vmem>>, vector<56x256xbf16>
    %c0_1 = arith.constant 0 : index
    %c0_2 = arith.constant 0 : index
    %1 = vector.load %arg3[%c0_1, %c0_2] : memref<1x128xf32, #tpu.memory_space<vmem>>, vector<1x128xf32>
    %2 = vector.shape_cast %1 : vector<1x128xf32> to vector<1x128xf32>
    %3 = vector.broadcast %2 : vector<1x128xf32> to vector<32x128xf32>
    %c0_3 = arith.constant 0 : index
    %c0_4 = arith.constant 0 : index
    %4 = vector.load %arg12[%c0_3, %c0_4] : memref<32x128xf32, #tpu.memory_space<vmem>>, vector<32x128xf32>
    tpu.vector_store %arg12[%c0_3, %c0_4], %3 {strides = array<i32>} : memref<32x128xf32, #tpu.memory_space<vmem>>, vector<32x128xf32>,
    %c0_5 = arith.constant 0 : index
    %c0_6 = arith.constant 0 : index
    %c0_7 = arith.constant 0 : index
    %5 = vector.load %arg2[%c0_5, %c0_6, %c0_7] : memref<3x256x128xbf16, #tpu.memory_space<vmem>>, vector<1x256x128xbf16>
    %6 = vector.shape_cast %5 : vector<1x256x128xbf16> to vector<256x128xbf16>
    %cst = arith.constant dense<0.000000e+00> : vector<56x128xf32>
    %7 = tpu.matmul %0, %6, %cst {dimension_numbers = #tpu.dot_dimension_numbers<[1], [0], [0], [1], [0, 0, 1, 1], [], []>} : vector<56x256xbf16>, vector<256x128xbf16>, vector<56x128xf32> -> vector<56x128xf32>
    %c0_8 = arith.constant 0 : index
    %c0_9 = arith.constant 0 : index
    %8 = vector.load %arg12[%c0_8, %c0_9] : memref<32x128xf32, #tpu.memory_space<vmem>>, vector<16x128xf32>
    %9 = vector.extract_strided_slice %7 {offsets = [7, 0], sizes = [16, 128], strides = [1, 1]} : vector<56x128xf32> to vector<16x128xf32>
    %10 = arith.addf %8, %9 : vector<16x128xf32>
    %c0_10 = arith.constant 0 : index
    %c0_11 = arith.constant 0 : index
    %11 = vector.load %arg12[%c0_10, %c0_11] : memref<32x128xf32, #tpu.memory_space<vmem>>, vector<16x128xf32>
    tpu.vector_store %arg12[%c0_10, %c0_11], %10 {strides = array<i32>} : memref<32x128xf32, #tpu.memory_space<vmem>>, vector<16x128xf32>,
    %c16 = arith.constant 16 : index
    %c0_12 = arith.constant 0 : index
    %12 = vector.load %arg12[%c16, %c0_12] : memref<32x128xf32, #tpu.memory_space<vmem>>, vector<16x128xf32>
    %13 = vector.extract_strided_slice %7 {offsets = [31, 0], sizes = [16, 128], strides = [1, 1]} : vector<56x128xf32> to vector<16x128xf32>
    %14 = arith.addf %12, %13 : vector<16x128xf32>
    %c16_13 = arith.constant 16 : index
    %c0_14 = arith.constant 0 : index
    %15 = vector.load %arg12[%c16_13, %c0_14] : memref<32x128xf32, #tpu.memory_space<vmem>>, vector<16x128xf32>
    tpu.vector_store %arg12[%c16_13, %c0_14], %14 {strides = array<i32>} : memref<32x128xf32, #tpu.memory_space<vmem>>, vector<16x128xf32>,
    %c1 = arith.constant 1 : index
    %c0_15 = arith.constant 0 : index
    %c0_16 = arith.constant 0 : index
    %16 = vector.load %arg2[%c1, %c0_15, %c0_16] : memref<3x256x128xbf16, #tpu.memory_space<vmem>>, vector<1x256x128xbf16>
    %17 = vector.shape_cast %16 : vector<1x256x128xbf16> to vector<256x128xbf16>
    %cst_17 = arith.constant dense<0.000000e+00> : vector<56x128xf32>
    %18 = tpu.matmul %0, %17, %cst_17 {dimension_numbers = #tpu.dot_dimension_numbers<[1], [0], [0], [1], [0, 0, 1, 1], [], []>} : vector<56x256xbf16>, vector<256x128xbf16>, vector<56x128xf32> -> vector<56x128xf32>
    %c0_18 = arith.constant 0 : index
    %c0_19 = arith.constant 0 : index
    %19 = vector.load %arg12[%c0_18, %c0_19] : memref<32x128xf32, #tpu.memory_space<vmem>>, vector<16x128xf32>
    %20 = vector.extract_strided_slice %18 {offsets = [8, 0], sizes = [16, 128], strides = [1, 1]} : vector<56x128xf32> to vector<16x128xf32>
    %21 = arith.addf %19, %20 : vector<16x128xf32>
    %c0_20 = arith.constant 0 : index
    %c0_21 = arith.constant 0 : index
    %22 = vector.load %arg12[%c0_20, %c0_21] : memref<32x128xf32, #tpu.memory_space<vmem>>, vector<16x128xf32>
    tpu.vector_store %arg12[%c0_20, %c0_21], %21 {strides = array<i32>} : memref<32x128xf32, #tpu.memory_space<vmem>>, vector<16x128xf32>,
    %c16_22 = arith.constant 16 : index
    %c0_23 = arith.constant 0 : index
    %23 = vector.load %arg12[%c16_22, %c0_23] : memref<32x128xf32, #tpu.memory_space<vmem>>, vector<16x128xf32>
    %24 = vector.extract_strided_slice %18 {offsets = [32, 0], sizes = [16, 128], strides = [1, 1]} : vector<56x128xf32> to vector<16x128xf32>
    %25 = arith.addf %23, %24 : vector<16x128xf32>
    %c16_24 = arith.constant 16 : index
    %c0_25 = arith.constant 0 : index
    %26 = vector.load %arg12[%c16_24, %c0_25] : memref<32x128xf32, #tpu.memory_space<vmem>>, vector<16x128xf32>
    tpu.vector_store %arg12[%c16_24, %c0_25], %25 {strides = array<i32>} : memref<32x128xf32, #tpu.memory_space<vmem>>, vector<16x128xf32>,
    %c2 = arith.constant 2 : index
    %c0_26 = arith.constant 0 : index
    %c0_27 = arith.constant 0 : index
    %27 = vector.load %arg2[%c2, %c0_26, %c0_27] : memref<3x256x128xbf16, #tpu.memory_space<vmem>>, vector<1x256x128xbf16>
    %28 = vector.shape_cast %27 : vector<1x256x128xbf16> to vector<256x128xbf16>
    %cst_28 = arith.constant dense<0.000000e+00> : vector<56x128xf32>
    %29 = tpu.matmul %0, %28, %cst_28 {dimension_numbers = #tpu.dot_dimension_numbers<[1], [0], [0], [1], [0, 0, 1, 1], [], []>} : vector<56x256xbf16>, vector<256x128xbf16>, vector<56x128xf32> -> vector<56x128xf32>
    %c0_29 = arith.constant 0 : index
    %c0_30 = arith.constant 0 : index
    %30 = vector.load %arg12[%c0_29, %c0_30] : memref<32x128xf32, #tpu.memory_space<vmem>>, vector<16x128xf32>
    %31 = vector.extract_strided_slice %29 {offsets = [9, 0], sizes = [16, 128], strides = [1, 1]} : vector<56x128xf32> to vector<16x128xf32>
    %32 = arith.addf %30, %31 : vector<16x128xf32>
    %c0_31 = arith.constant 0 : index
    %c0_32 = arith.constant 0 : index
    %33 = vector.load %arg12[%c0_31, %c0_32] : memref<32x128xf32, #tpu.memory_space<vmem>>, vector<16x128xf32>
    tpu.vector_store %arg12[%c0_31, %c0_32], %32 {strides = array<i32>} : memref<32x128xf32, #tpu.memory_space<vmem>>, vector<16x128xf32>,
    %c16_33 = arith.constant 16 : index
    %c0_34 = arith.constant 0 : index
    %34 = vector.load %arg12[%c16_33, %c0_34] : memref<32x128xf32, #tpu.memory_space<vmem>>, vector<16x128xf32>
    %35 = vector.extract_strided_slice %29 {offsets = [33, 0], sizes = [16, 128], strides = [1, 1]} : vector<56x128xf32> to vector<16x128xf32>
    %36 = arith.addf %34, %35 : vector<16x128xf32>
    %c16_35 = arith.constant 16 : index
    %c0_36 = arith.constant 0 : index
    %37 = vector.load %arg12[%c16_35, %c0_36] : memref<32x128xf32, #tpu.memory_space<vmem>>, vector<16x128xf32>
    tpu.vector_store %arg12[%c16_35, %c0_36], %36 {strides = array<i32>} : memref<32x128xf32, #tpu.memory_space<vmem>>, vector<16x128xf32>,
    %c0_37 = arith.constant 0 : index
    %c0_38 = arith.constant 0 : index
    %38 = vector.load %arg12[%c0_37, %c0_38] : memref<32x128xf32, #tpu.memory_space<vmem>>, vector<32x128xf32>
    %c0_39 = arith.constant 0 : index
    %c0_40 = arith.constant 0 : index
    %39 = vector.load %arg10[%c0_39, %c0_40] : memref<128x128xf32, #tpu.memory_space<vmem>>, vector<128x128xf32>
    %cst_41 = arith.constant dense<0.000000e+00> : vector<32x128xf32>
    %40 = tpu.matmul %38, %39, %cst_41 {dimension_numbers = #tpu.dot_dimension_numbers<[1], [0], [0], [1], [0, 0, 1, 1], [], []>} : vector<32x128xf32>, vector<128x128xf32>, vector<32x128xf32> -> vector<32x128xf32>
    %cst_42 = arith.constant dense<0.000000e+00> : vector<128xf32>
    %41 = vector.multi_reduction <add>, %40, %cst_42 [0] : vector<32x128xf32> to vector<128xf32>
    %42 = vector.shape_cast %41 : vector<128xf32> to vector<1x128xf32>
    %cst_43 = arith.constant 5.120000e+02 : f32
    %43 = vector.broadcast %cst_43 : f32 to vector<1x128xf32>
    %44 = arith.divf %42, %43 : vector<1x128xf32>
    %45 = vector.broadcast %44 : vector<1x128xf32> to vector<32x128xf32>
    %46 = arith.subf %38, %45 : vector<32x128xf32>
    %47 = arith.mulf %46, %46 : vector<32x128xf32>
    %cst_44 = arith.constant dense<0.000000e+00> : vector<32x128xf32>
    %48 = tpu.matmul %47, %39, %cst_44 {dimension_numbers = #tpu.dot_dimension_numbers<[1], [0], [0], [1], [0, 0, 1, 1], [], []>} : vector<32x128xf32>, vector<128x128xf32>, vector<32x128xf32> -> vector<32x128xf32>
    %cst_45 = arith.constant dense<0.000000e+00> : vector<128xf32>
    %49 = vector.multi_reduction <add>, %48, %cst_45 [0] : vector<32x128xf32> to vector<128xf32>
    %50 = vector.shape_cast %49 : vector<128xf32> to vector<1x128xf32>
    %cst_46 = arith.constant 5.120000e+02 : f32
    %51 = vector.broadcast %cst_46 : f32 to vector<1x128xf32>
    %52 = arith.divf %50, %51 : vector<1x128xf32>
    %c0_47 = arith.constant 0 : index
    %c0_48 = arith.constant 0 : index
    %53 = vector.load %arg4[%c0_47, %c0_48] : memref<1x128xf32, #tpu.memory_space<vmem>>, vector<1x128xf32>
    %cst_49 = arith.constant 9.99999974E-6 : f32
    %54 = vector.broadcast %cst_49 : f32 to vector<1x128xf32>
    %55 = arith.addf %52, %54 : vector<1x128xf32>
    %56 = math.rsqrt %55 : vector<1x128xf32>
    %57 = arith.mulf %53, %56 : vector<1x128xf32>
    %c0_50 = arith.constant 0 : index
    %c0_51 = arith.constant 0 : index
    %58 = vector.load %arg5[%c0_50, %c0_51] : memref<1x128xf32, #tpu.memory_space<vmem>>, vector<1x128xf32>
    %59 = arith.mulf %44, %57 : vector<1x128xf32>
    %60 = arith.subf %58, %59 : vector<1x128xf32>
    %61 = vector.broadcast %57 : vector<1x128xf32> to vector<32x128xf32>
    %62 = arith.mulf %38, %61 : vector<32x128xf32>
    %63 = vector.broadcast %60 : vector<1x128xf32> to vector<32x128xf32>
    %64 = arith.addf %62, %63 : vector<32x128xf32>
    %cst_52 = arith.constant 0.000000e+00 : f32
    %65 = vector.broadcast %cst_52 : f32 to vector<32x128xf32>
    %66 = arith.maximumf %64, %65 : vector<32x128xf32>
    %cst_53 = arith.constant 0.000000e+00 : bf16
    %67 = vector.broadcast %cst_53 : bf16 to vector<56x128xbf16>
    %c0_54 = arith.constant 0 : index
    %c0_55 = arith.constant 0 : index
    %68 = vector.load %arg13[%c0_54, %c0_55] : memref<56x128xbf16, #tpu.memory_space<vmem>>, vector<56x128xbf16>
    tpu.vector_store %arg13[%c0_54, %c0_55], %67 {strides = array<i32>} : memref<56x128xbf16, #tpu.memory_space<vmem>>, vector<56x128xbf16>,
    %69 = vector.extract_strided_slice %66 {offsets = [0, 0], sizes = [16, 128], strides = [1, 1]} : vector<32x128xf32> to vector<16x128xf32>
    %70 = arith.truncf %69 : vector<16x128xf32> to vector<16x128xbf16>
    %c8 = arith.constant 8 : index
    %c0_56 = arith.constant 0 : index
    %71 = vector.load %arg13[%c8, %c0_56] : memref<56x128xbf16, #tpu.memory_space<vmem>>, vector<16x128xbf16>
    tpu.vector_store %arg13[%c8, %c0_56], %70 {strides = array<i32>} : memref<56x128xbf16, #tpu.memory_space<vmem>>, vector<16x128xbf16>,
    %72 = vector.extract_strided_slice %66 {offsets = [16, 0], sizes = [16, 128], strides = [1, 1]} : vector<32x128xf32> to vector<16x128xf32>
    %73 = arith.truncf %72 : vector<16x128xf32> to vector<16x128xbf16>
    %c32 = arith.constant 32 : index
    %c0_57 = arith.constant 0 : index
    %74 = vector.load %arg13[%c32, %c0_57] : memref<56x128xbf16, #tpu.memory_space<vmem>>, vector<16x128xbf16>
    tpu.vector_store %arg13[%c32, %c0_57], %73 {strides = array<i32>} : memref<56x128xbf16, #tpu.memory_space<vmem>>, vector<16x128xbf16>,
    %c0_58 = arith.constant 0 : index
    %c0_59 = arith.constant 0 : index
    %75 = vector.load %arg13[%c0_58, %c0_59] : memref<56x128xbf16, #tpu.memory_space<vmem>>, vector<56x128xbf16>
    %c0_60 = arith.constant 0 : index
    %c0_61 = arith.constant 0 : index
    %76 = vector.load %arg7[%c0_60, %c0_61] : memref<1x128xf32, #tpu.memory_space<vmem>>, vector<1x128xf32>
    %77 = vector.shape_cast %76 : vector<1x128xf32> to vector<1x128xf32>
    %78 = vector.broadcast %77 : vector<1x128xf32> to vector<32x128xf32>
    %c0_62 = arith.constant 0 : index
    %c0_63 = arith.constant 0 : index
    %79 = vector.load %arg11[%c0_62, %c0_63] : memref<32x128xf32, #tpu.memory_space<vmem>>, vector<32x128xf32>
    tpu.vector_store %arg11[%c0_62, %c0_63], %78 {strides = array<i32>} : memref<32x128xf32, #tpu.memory_space<vmem>>, vector<32x128xf32>,
    %c0_64 = arith.constant 0 : index
    %c0_65 = arith.constant 0 : index
    %c0_66 = arith.constant 0 : index
    %80 = vector.load %arg6[%c0_64, %c0_65, %c0_66] : memref<3x128x128xbf16, #tpu.memory_space<vmem>>, vector<1x128x128xbf16>
    %81 = vector.shape_cast %80 : vector<1x128x128xbf16> to vector<128x128xbf16>
    %cst_67 = arith.constant dense<0.000000e+00> : vector<56x128xf32>
    %82 = tpu.matmul %75, %81, %cst_67 {dimension_numbers = #tpu.dot_dimension_numbers<[1], [0], [0], [1], [0, 0, 1, 1], [], []>} : vector<56x128xbf16>, vector<128x128xbf16>, vector<56x128xf32> -> vector<56x128xf32>
    %c0_68 = arith.constant 0 : index
    %c0_69 = arith.constant 0 : index
    %83 = vector.load %arg11[%c0_68, %c0_69] : memref<32x128xf32, #tpu.memory_space<vmem>>, vector<16x128xf32>
    %84 = vector.extract_strided_slice %82 {offsets = [7, 0], sizes = [16, 128], strides = [1, 1]} : vector<56x128xf32> to vector<16x128xf32>
    %85 = arith.addf %83, %84 : vector<16x128xf32>
    %c0_70 = arith.constant 0 : index
    %c0_71 = arith.constant 0 : index
    %86 = vector.load %arg11[%c0_70, %c0_71] : memref<32x128xf32, #tpu.memory_space<vmem>>, vector<16x128xf32>
    tpu.vector_store %arg11[%c0_70, %c0_71], %85 {strides = array<i32>} : memref<32x128xf32, #tpu.memory_space<vmem>>, vector<16x128xf32>,
    %c16_72 = arith.constant 16 : index
    %c0_73 = arith.constant 0 : index
    %87 = vector.load %arg11[%c16_72, %c0_73] : memref<32x128xf32, #tpu.memory_space<vmem>>, vector<16x128xf32>
    %88 = vector.extract_strided_slice %82 {offsets = [31, 0], sizes = [16, 128], strides = [1, 1]} : vector<56x128xf32> to vector<16x128xf32>
    %89 = arith.addf %87, %88 : vector<16x128xf32>
    %c16_74 = arith.constant 16 : index
    %c0_75 = arith.constant 0 : index
    %90 = vector.load %arg11[%c16_74, %c0_75] : memref<32x128xf32, #tpu.memory_space<vmem>>, vector<16x128xf32>
    tpu.vector_store %arg11[%c16_74, %c0_75], %89 {strides = array<i32>} : memref<32x128xf32, #tpu.memory_space<vmem>>, vector<16x128xf32>,
    %c1_76 = arith.constant 1 : index
    %c0_77 = arith.constant 0 : index
    %c0_78 = arith.constant 0 : index
    %91 = vector.load %arg6[%c1_76, %c0_77, %c0_78] : memref<3x128x128xbf16, #tpu.memory_space<vmem>>, vector<1x128x128xbf16>
    %92 = vector.shape_cast %91 : vector<1x128x128xbf16> to vector<128x128xbf16>
    %cst_79 = arith.constant dense<0.000000e+00> : vector<56x128xf32>
    %93 = tpu.matmul %75, %92, %cst_79 {dimension_numbers = #tpu.dot_dimension_numbers<[1], [0], [0], [1], [0, 0, 1, 1], [], []>} : vector<56x128xbf16>, vector<128x128xbf16>, vector<56x128xf32> -> vector<56x128xf32>
    %c0_80 = arith.constant 0 : index
    %c0_81 = arith.constant 0 : index
    %94 = vector.load %arg11[%c0_80, %c0_81] : memref<32x128xf32, #tpu.memory_space<vmem>>, vector<16x128xf32>
    %95 = vector.extract_strided_slice %93 {offsets = [8, 0], sizes = [16, 128], strides = [1, 1]} : vector<56x128xf32> to vector<16x128xf32>
    %96 = arith.addf %94, %95 : vector<16x128xf32>
    %c0_82 = arith.constant 0 : index
    %c0_83 = arith.constant 0 : index
    %97 = vector.load %arg11[%c0_82, %c0_83] : memref<32x128xf32, #tpu.memory_space<vmem>>, vector<16x128xf32>
    tpu.vector_store %arg11[%c0_82, %c0_83], %96 {strides = array<i32>} : memref<32x128xf32, #tpu.memory_space<vmem>>, vector<16x128xf32>,
    %c16_84 = arith.constant 16 : index
    %c0_85 = arith.constant 0 : index
    %98 = vector.load %arg11[%c16_84, %c0_85] : memref<32x128xf32, #tpu.memory_space<vmem>>, vector<16x128xf32>
    %99 = vector.extract_strided_slice %93 {offsets = [32, 0], sizes = [16, 128], strides = [1, 1]} : vector<56x128xf32> to vector<16x128xf32>
    %100 = arith.addf %98, %99 : vector<16x128xf32>
    %c16_86 = arith.constant 16 : index
    %c0_87 = arith.constant 0 : index
    %101 = vector.load %arg11[%c16_86, %c0_87] : memref<32x128xf32, #tpu.memory_space<vmem>>, vector<16x128xf32>
    tpu.vector_store %arg11[%c16_86, %c0_87], %100 {strides = array<i32>} : memref<32x128xf32, #tpu.memory_space<vmem>>, vector<16x128xf32>,
    %c2_88 = arith.constant 2 : index
    %c0_89 = arith.constant 0 : index
    %c0_90 = arith.constant 0 : index
    %102 = vector.load %arg6[%c2_88, %c0_89, %c0_90] : memref<3x128x128xbf16, #tpu.memory_space<vmem>>, vector<1x128x128xbf16>
    %103 = vector.shape_cast %102 : vector<1x128x128xbf16> to vector<128x128xbf16>
    %cst_91 = arith.constant dense<0.000000e+00> : vector<56x128xf32>
    %104 = tpu.matmul %75, %103, %cst_91 {dimension_numbers = #tpu.dot_dimension_numbers<[1], [0], [0], [1], [0, 0, 1, 1], [], []>} : vector<56x128xbf16>, vector<128x128xbf16>, vector<56x128xf32> -> vector<56x128xf32>
    %c0_92 = arith.constant 0 : index
    %c0_93 = arith.constant 0 : index
    %105 = vector.load %arg11[%c0_92, %c0_93] : memref<32x128xf32, #tpu.memory_space<vmem>>, vector<16x128xf32>
    %106 = vector.extract_strided_slice %104 {offsets = [9, 0], sizes = [16, 128], strides = [1, 1]} : vector<56x128xf32> to vector<16x128xf32>
    %107 = arith.addf %105, %106 : vector<16x128xf32>
    %c0_94 = arith.constant 0 : index
    %c0_95 = arith.constant 0 : index
    %108 = vector.load %arg11[%c0_94, %c0_95] : memref<32x128xf32, #tpu.memory_space<vmem>>, vector<16x128xf32>
    tpu.vector_store %arg11[%c0_94, %c0_95], %107 {strides = array<i32>} : memref<32x128xf32, #tpu.memory_space<vmem>>, vector<16x128xf32>,
    %c16_96 = arith.constant 16 : index
    %c0_97 = arith.constant 0 : index
    %109 = vector.load %arg11[%c16_96, %c0_97] : memref<32x128xf32, #tpu.memory_space<vmem>>, vector<16x128xf32>
    %110 = vector.extract_strided_slice %104 {offsets = [33, 0], sizes = [16, 128], strides = [1, 1]} : vector<56x128xf32> to vector<16x128xf32>
    %111 = arith.addf %109, %110 : vector<16x128xf32>
    %c16_98 = arith.constant 16 : index
    %c0_99 = arith.constant 0 : index
    %112 = vector.load %arg11[%c16_98, %c0_99] : memref<32x128xf32, #tpu.memory_space<vmem>>, vector<16x128xf32>
    tpu.vector_store %arg11[%c16_98, %c0_99], %111 {strides = array<i32>} : memref<32x128xf32, #tpu.memory_space<vmem>>, vector<16x128xf32>,
    %c0_100 = arith.constant 0 : index
    %c0_101 = arith.constant 0 : index
    %113 = vector.load %arg11[%c0_100, %c0_101] : memref<32x128xf32, #tpu.memory_space<vmem>>, vector<32x128xf32>
    %c0_102 = arith.constant 0 : index
    %c0_103 = arith.constant 0 : index
    %114 = vector.load %arg10[%c0_102, %c0_103] : memref<128x128xf32, #tpu.memory_space<vmem>>, vector<128x128xf32>
    %cst_104 = arith.constant dense<0.000000e+00> : vector<32x128xf32>
    %115 = tpu.matmul %113, %114, %cst_104 {dimension_numbers = #tpu.dot_dimension_numbers<[1], [0], [0], [1], [0, 0, 1, 1], [], []>} : vector<32x128xf32>, vector<128x128xf32>, vector<32x128xf32> -> vector<32x128xf32>
    %cst_105 = arith.constant dense<0.000000e+00> : vector<128xf32>
    %116 = vector.multi_reduction <add>, %115, %cst_105 [0] : vector<32x128xf32> to vector<128xf32>
    %117 = vector.shape_cast %116 : vector<128xf32> to vector<1x128xf32>
    %cst_106 = arith.constant 5.120000e+02 : f32
    %118 = vector.broadcast %cst_106 : f32 to vector<1x128xf32>
    %119 = arith.divf %117, %118 : vector<1x128xf32>
    %120 = vector.broadcast %119 : vector<1x128xf32> to vector<32x128xf32>
    %121 = arith.subf %113, %120 : vector<32x128xf32>
    %122 = arith.mulf %121, %121 : vector<32x128xf32>
    %cst_107 = arith.constant dense<0.000000e+00> : vector<32x128xf32>
    %123 = tpu.matmul %122, %114, %cst_107 {dimension_numbers = #tpu.dot_dimension_numbers<[1], [0], [0], [1], [0, 0, 1, 1], [], []>} : vector<32x128xf32>, vector<128x128xf32>, vector<32x128xf32> -> vector<32x128xf32>
    %cst_108 = arith.constant dense<0.000000e+00> : vector<128xf32>
    %124 = vector.multi_reduction <add>, %123, %cst_108 [0] : vector<32x128xf32> to vector<128xf32>
    %125 = vector.shape_cast %124 : vector<128xf32> to vector<1x128xf32>
    %cst_109 = arith.constant 5.120000e+02 : f32
    %126 = vector.broadcast %cst_109 : f32 to vector<1x128xf32>
    %127 = arith.divf %125, %126 : vector<1x128xf32>
    %c0_110 = arith.constant 0 : index
    %c0_111 = arith.constant 0 : index
    %128 = vector.load %arg8[%c0_110, %c0_111] : memref<1x128xf32, #tpu.memory_space<vmem>>, vector<1x128xf32>
    %cst_112 = arith.constant 9.99999974E-6 : f32
    %129 = vector.broadcast %cst_112 : f32 to vector<1x128xf32>
    %130 = arith.addf %127, %129 : vector<1x128xf32>
    %131 = math.rsqrt %130 : vector<1x128xf32>
    %132 = arith.mulf %128, %131 : vector<1x128xf32>
    %c0_113 = arith.constant 0 : index
    %c0_114 = arith.constant 0 : index
    %133 = vector.load %arg9[%c0_113, %c0_114] : memref<1x128xf32, #tpu.memory_space<vmem>>, vector<1x128xf32>
    %134 = arith.mulf %119, %132 : vector<1x128xf32>
    %135 = arith.subf %133, %134 : vector<1x128xf32>
    %136 = vector.broadcast %132 : vector<1x128xf32> to vector<32x128xf32>
    %137 = arith.mulf %113, %136 : vector<32x128xf32>
    %138 = vector.broadcast %135 : vector<1x128xf32> to vector<32x128xf32>
    %139 = arith.addf %137, %138 : vector<32x128xf32>
    %cst_115 = arith.constant 0.000000e+00 : f32
    %140 = vector.broadcast %cst_115 : f32 to vector<32x128xf32>
    %141 = arith.maximumf %139, %140 : vector<32x128xf32>
    %c0_116 = arith.constant 0 : index
    %c0_117 = arith.constant 0 : index
    %142 = vector.load %arg11[%c0_116, %c0_117] : memref<32x128xf32, #tpu.memory_space<vmem>>, vector<32x128xf32>
    tpu.vector_store %arg11[%c0_116, %c0_117], %141 {strides = array<i32>} : memref<32x128xf32, #tpu.memory_space<vmem>>, vector<32x128xf32>,
    return
  }
  func.func @transform_0(%arg0: i32) -> (i32, i32) {
    %c0_i32 = arith.constant 0 : i32
    %c0_i32_0 = arith.constant 0 : i32
    %c0_i32_1 = arith.constant 0 : i32
    return %c0_i32, %c0_i32_0 : i32, i32
  }
  func.func @transform_1(%arg0: i32) -> (i32, i32, i32) {
    %c0_i32 = arith.constant 0 : i32
    %c0_i32_0 = arith.constant 0 : i32
    %c0_i32_1 = arith.constant 0 : i32
    %c0_i32_2 = arith.constant 0 : i32
    return %c0_i32, %c0_i32_0, %c0_i32_1 : i32, i32, i32
  }
  func.func @transform_2(%arg0: i32) -> (i32, i32) {
    %c0_i32 = arith.constant 0 : i32
    %c0_i32_0 = arith.constant 0 : i32
    %c0_i32_1 = arith.constant 0 : i32
    return %c0_i32, %c0_i32_0 : i32, i32
  }
  func.func @transform_3(%arg0: i32) -> (i32, i32) {
    %c0_i32 = arith.constant 0 : i32
    %c0_i32_0 = arith.constant 0 : i32
    %c0_i32_1 = arith.constant 0 : i32
    return %c0_i32, %c0_i32_0 : i32, i32
  }
  func.func @transform_4(%arg0: i32) -> (i32, i32) {
    %c0_i32 = arith.constant 0 : i32
    %c0_i32_0 = arith.constant 0 : i32
    %c0_i32_1 = arith.constant 0 : i32
    return %c0_i32, %c0_i32_0 : i32, i32
  }
  func.func @transform_5(%arg0: i32) -> (i32, i32, i32) {
    %c0_i32 = arith.constant 0 : i32
    %c0_i32_0 = arith.constant 0 : i32
    %c0_i32_1 = arith.constant 0 : i32
    %c0_i32_2 = arith.constant 0 : i32
    return %c0_i32, %c0_i32_0, %c0_i32_1 : i32, i32, i32
  }
  func.func @transform_6(%arg0: i32) -> (i32, i32) {
    %c0_i32 = arith.constant 0 : i32
    %c0_i32_0 = arith.constant 0 : i32
    %c0_i32_1 = arith.constant 0 : i32
    return %c0_i32, %c0_i32_0 : i32, i32
  }
  func.func @transform_7(%arg0: i32) -> (i32, i32) {
    %c0_i32 = arith.constant 0 : i32
    %c0_i32_0 = arith.constant 0 : i32
    %c0_i32_1 = arith.constant 0 : i32
    return %c0_i32, %c0_i32_0 : i32, i32
  }
  func.func @transform_8(%arg0: i32) -> (i32, i32) {
    %c0_i32 = arith.constant 0 : i32
    %c0_i32_0 = arith.constant 0 : i32
    %c0_i32_1 = arith.constant 0 : i32
    return %c0_i32, %c0_i32_0 : i32, i32
  }
  func.func @transform_9(%arg0: i32) -> (i32, i32) {
    %c0_i32 = arith.constant 0 : i32
    %c0_i32_0 = arith.constant 0 : i32
    %c0_i32_1 = arith.constant 0 : i32
    return %c0_i32, %c0_i32_0 : i32, i32
  }
  func.func @transform_10(%arg0: i32) -> (i32, i32) {
    %c0_i32 = arith.constant 0 : i32
    %c0_i32_0 = arith.constant 0 : i32
    %c0_i32_1 = arith.constant 0 : i32
    return %c0_i32, %c0_i32_0 : i32, i32
  }
}

</mosaic_0001>

<llo_original>
// kernel: tile.42
$region0: #{tile.42}
  #allocation2 [shape = 's32[1]{0}', space=sflag, size = 0x4, scoped, tag = 'scoped memory for tile.42']
  %s0 = inlined_call_operand.hbm [shape: f32[4], index: 0, kind: input, shape index: {}]
  %s1 = inlined_call_operand.vmem [shape: f32[4,4], index: 1, kind: output, shape index: {}]
  $region1: #{tile.42} parent=0
    #allocation0 [shape = 'u8[512]{0}', space=vmem, size = 0x400, scoped, tag = 'operand span for operand 0']
    #allocation1 [shape = 's32[1]{0}', space=sflag, size = 0x4, scoped, tag = 'scoped memory for tile.42']
    %2 = vsyncpa [#allocation1], 0
    // Predicated region
    $region2: #{tile.42} parent=1 // pred_check
      _
    $region3: #{tile.42} parent=1 // pred_check_branch
      %4 = sbr.rel (0) target = $region5
    $region4: #{tile.42} parent=1 // pred_region
      %6 = vsyncadd [#allocation1], 0
      %s8 = sshll.u32 %s0, 4
      %s9 = int_to_ptr.hbm [resolvable:$true] %s8
      %s10 = sshll.u32 [#allocation0], 4
      %s11 = int_to_ptr.vmem [resolvable:$true] %s10
      %13 = dma.hbm_to_vmem [thread:$0]  %s9, 16, %s11, [#allocation1]
    $region5: #{tile.42} parent=1 // pred_fallthru
      _
    // Predicated region
    $region6: #{tile.42} parent=1 // pred_check
      _
    $region7: #{tile.42} parent=1 // pred_check_branch
      %15 = sbr.rel (0) target = $region9
    $region8: #{tile.42} parent=1 // pred_region
      %17 = dma.done [#allocation1], 16
    $region9: #{tile.42} parent=1 // pred_fallthru
      _
    %v18 = vld [vmem:[#allocation0] ss:$0 sm:$0xff]
    %19 = vst [vmem:[%s1] sm:$0xf] %v18
    %20 = vsyncpa [#allocation1], 1

// kernel: tile.46
$region0: #{tile.46}
  #allocation0 [shape = 's32[1]{0}', space=sflag, size = 0x4, scoped, tag = 'scoped memory for tile.46']
  %s0 = inlined_call_operand.vmem [shape: f32[16], index: 0, kind: input, shape index: {}]
  %s1 = inlined_call_operand.vmem [shape: f32[8,16], index: 1, kind: output, shape index: {}]
  // Predicated region
  $region2: #{tile.46} parent=0 // pred_check
    _
  $region3: #{tile.46} parent=0 // pred_check_branch
    %3 = sbr.rel (0) target = $region5
  $region4: #{tile.46} parent=0 // pred_region
    _
  $region5: #{tile.46} parent=0 // pred_fallthru
    _
  %v4 = vld [vmem:[%s0] ss:$0 sm:$0xff]
  %5 = vst [vmem:[%s1] sm:$0xff] %v4

// kernel: tile.45
$region0: #{tile.45}
  %s0 = inlined_call_operand.vmem [shape: f32[4,4], index: 0, kind: input, shape index: {}]
  %s1 = inlined_call_operand.vmem [shape: f32[16], index: 1, kind: output, shape index: {}]
  $region1: #{tile.45} parent=0
    #allocation0 [shape = 'u8[4096]{0}', space=vmem, size = 0x1000, scoped, tag = 'scoped mem for output reshape']
    #allocation1 [shape = 'u8[4096]{0}', space=vmem, size = 0x1000, scoped, tag = 'scoped mem for input reshape']
    %s3 = ssub.s32 16, 1
    %v4 = vld [vmem:[%s0] sm:%s3]
    %5 = vst [vmem:[#allocation1] sm:%s3] %v4
    %v6 = vld [vmem:[#allocation1] sm:$0x1]
    %vm7 = vcmask 31744
    %8 = vst.msk [vmem:[#allocation0] sm:$0x1] %vm7, %v6
    %s9 = scalar_lea.vmem [#allocation1], 3
    %v10 = vld [vmem:[%s9] sm:$0x1]
    %11 = vrot.lane.b32.xlu0 %v10, 12
    %v12 = vpop.permute.xlu0 %11
    %vm13 = vcmask 130144
    %14 = vst.msk [vmem:[#allocation0] sm:$0x1] %vm13, %v12
    %s15 = scalar_lea.vmem [#allocation1], 2
    %v16 = vld [vmem:[%s15] sm:$0x1]
    %17 = vrot.lane.b32.xlu0 %v16, 8
    %v18 = vpop.permute.xlu0 %17
    %vm19 = vcmask 97344
    %20 = vst.msk [vmem:[#allocation0] sm:$0x1] %vm19, %v18
    %s21 = scalar_lea.vmem [#allocation1], 1
    %v22 = vld [vmem:[%s21] sm:$0x1]
    %23 = vrot.lane.b32.xlu0 %v22, 4
    %v24 = vpop.permute.xlu0 %23
    %vm25 = vcmask 64544
    %26 = vst.msk [vmem:[#allocation0] sm:$0x1] %vm25, %v24
    %s28 = ssub.s32 2, 1
    %v29 = vld [vmem:[#allocation0] sm:%s28]
    %s31 = ssub.s32 2, 1
    %32 = vst [vmem:[%s1] sm:%s31] %v29

// kernel: tile.47
$region0: #{tile.47}
  %s0 = inlined_call_operand.vmem [shape: f32[8,16], index: 0, kind: input, shape index: {}]
  %s1 = inlined_call_operand.vmem [shape: f32[1,128], index: 1, kind: output, shape index: {}]
  $region1: #{tile.47} parent=0
    #allocation0 [shape = 'u8[4096]{0}', space=vmem, size = 0x1000, scoped, tag = 'scoped mem for output reshape']
    %v2 = vld [vmem:[%s0] sm:$0x1]
    %vm3 = vcmask 130048
    %4 = vst.msk [vmem:[#allocation0] sm:$0x1] %vm3, %v2
    %s5 = scalar_lea.vmem %s0, 7
    %v6 = vld [vmem:[%s5] sm:$0x1]
    %7 = vrot.lane.b32.xlu0 %v6, 112
    %v8 = vpop.permute.xlu0 %7
    %vm9 = vcmask 1048448
    %10 = vst.msk [vmem:[#allocation0] sm:$0x1] %vm9, %v8
    %s11 = scalar_lea.vmem %s0, 6
    %v12 = vld [vmem:[%s11] sm:$0x1]
    %13 = vrot.lane.b32.xlu0 %v12, 96
    %v14 = vpop.permute.xlu0 %13
    %vm15 = vcmask 917248
    %16 = vst.msk [vmem:[#allocation0] sm:$0x1] %vm15, %v14
    %s17 = scalar_lea.vmem %s0, 5
    %v18 = vld [vmem:[%s17] sm:$0x1]
    %19 = vrot.lane.b32.xlu0 %v18, 80
    %v20 = vpop.permute.xlu0 %19
    %vm21 = vcmask 786048
    %22 = vst.msk [vmem:[#allocation0] sm:$0x1] %vm21, %v20
    %s23 = scalar_lea.vmem %s0, 4
    %v24 = vld [vmem:[%s23] sm:$0x1]
    %25 = vrot.lane.b32.xlu0 %v24, 64
    %v26 = vpop.permute.xlu0 %25
    %vm27 = vcmask 654848
    %28 = vst.msk [vmem:[#allocation0] sm:$0x1] %vm27, %v26
    %s29 = scalar_lea.vmem %s0, 3
    %v30 = vld [vmem:[%s29] sm:$0x1]
    %31 = vrot.lane.b32.xlu0 %v30, 48
    %v32 = vpop.permute.xlu0 %31
    %vm33 = vcmask 523648
    %34 = vst.msk [vmem:[#allocation0] sm:$0x1] %vm33, %v32
    %s35 = scalar_lea.vmem %s0, 2
    %v36 = vld [vmem:[%s35] sm:$0x1]
    %37 = vrot.lane.b32.xlu0 %v36, 32
    %v38 = vpop.permute.xlu0 %37
    %vm39 = vcmask 392448
    %40 = vst.msk [vmem:[#allocation0] sm:$0x1] %vm39, %v38
    %s41 = scalar_lea.vmem %s0, 1
    %v42 = vld [vmem:[%s41] sm:$0x1]
    %43 = vrot.lane.b32.xlu0 %v42, 16
    %v44 = vpop.permute.xlu0 %43
    %vm45 = vcmask 261248
    %46 = vst.msk [vmem:[#allocation0] sm:$0x1] %vm45, %v44
    %s48 = ssub.s32 2, 1
    %v49 = vld [vmem:[#allocation0] sm:%s48]
    %s51 = ssub.s32 2, 1
    %52 = vst [vmem:[%s1] sm:%s51] %v49

// kernel: tile.51
$region0: #{tile.51}
  #allocation2 [shape = 's32[1]{0}', space=sflag, size = 0x4, scoped, tag = 'scoped memory for tile.51']
  %s0 = inlined_call_operand.hbm [shape: f32[8], index: 0, kind: input, shape index: {}]
  %s1 = inlined_call_operand.vmem [shape: f32[16,8], index: 1, kind: output, shape index: {}]
  $region1: #{tile.51} parent=0
    #allocation0 [shape = 'u8[512]{0}', space=vmem, size = 0x400, scoped, tag = 'operand span for operand 0']
    #allocation1 [shape = 's32[1]{0}', space=sflag, size = 0x4, scoped, tag = 'scoped memory for tile.51']
    %2 = vsyncpa [#allocation1], 0
    // Predicated region
    $region2: #{tile.51} parent=1 // pred_check
      _
    $region3: #{tile.51} parent=1 // pred_check_branch
      %4 = sbr.rel (0) target = $region5
    $region4: #{tile.51} parent=1 // pred_region
      %6 = vsyncadd [#allocation1], 0
      %s8 = sshll.u32 %s0, 4
      %s9 = int_to_ptr.hbm [resolvable:$true] %s8
      %s10 = sshll.u32 [#allocation0], 4
      %s11 = int_to_ptr.vmem [resolvable:$true] %s10
      %13 = dma.hbm_to_vmem [thread:$0]  %s9, 16, %s11, [#allocation1]
    $region5: #{tile.51} parent=1 // pred_fallthru
      _
    // Predicated region
    $region6: #{tile.51} parent=1 // pred_check
      _
    $region7: #{tile.51} parent=1 // pred_check_branch
      %15 = sbr.rel (0) target = $region9
    $region8: #{tile.51} parent=1 // pred_region
      %17 = dma.done [#allocation1], 16
    $region9: #{tile.51} parent=1 // pred_fallthru
      _
    %v18 = vld [vmem:[#allocation0] ss:$0 sm:$0xff]
    %19 = vst [vmem:[%s1] sm:$0xff] %v18
    %s20 = scalar_lea.vmem %s1, 8
    %21 = vst [vmem:[%s20] sm:$0xff] %v18
    %22 = vsyncpa [#allocation1], 1

// kernel: tile.52
$region0: #{tile.52}
  %s0 = inlined_call_operand.vmem [shape: f32[16,8], index: 0, kind: input, shape index: {}]
  %s1 = inlined_call_operand.vmem [shape: f32[1,128], index: 1, kind: output, shape index: {}]
  $region1: #{tile.52} parent=0
    #allocation0 [shape = 'u8[4096]{0}', space=vmem, size = 0x1000, scoped, tag = 'scoped mem for output reshape']
    %v2 = vld [vmem:[%s0] sm:$0x1]
    %vm3 = vcmask 64512
    %4 = vst.msk [vmem:[#allocation0] sm:$0x1] %vm3, %v2
    %s5 = scalar_lea.vmem %s0, 15
    %v6 = vld [vmem:[%s5] sm:$0x1]
    %7 = vrot.lane.b32.xlu0 %v6, 120
    %v8 = vpop.permute.xlu0 %7
    %vm9 = vcmask 1048512
    %10 = vst.msk [vmem:[#allocation0] sm:$0x1] %vm9, %v8
    %s11 = scalar_lea.vmem %s0, 14
    %v12 = vld [vmem:[%s11] sm:$0x1]
    %13 = vrot.lane.b32.xlu0 %v12, 112
    %v14 = vpop.permute.xlu0 %13
    %vm15 = vcmask 982912
    %16 = vst.msk [vmem:[#allocation0] sm:$0x1] %vm15, %v14
    %s17 = scalar_lea.vmem %s0, 13
    %v18 = vld [vmem:[%s17] sm:$0x1]
    %19 = vrot.lane.b32.xlu0 %v18, 104
    %v20 = vpop.permute.xlu0 %19
    %vm21 = vcmask 917312
    %22 = vst.msk [vmem:[#allocation0] sm:$0x1] %vm21, %v20
    %s23 = scalar_lea.vmem %s0, 12
    %v24 = vld [vmem:[%s23] sm:$0x1]
    %25 = vrot.lane.b32.xlu0 %v24, 96
    %v26 = vpop.permute.xlu0 %25
    %vm27 = vcmask 851712
    %28 = vst.msk [vmem:[#allocation0] sm:$0x1] %vm27, %v26
    %s29 = scalar_lea.vmem %s0, 11
    %v30 = vld [vmem:[%s29] sm:$0x1]
    %31 = vrot.lane.b32.xlu0 %v30, 88
    %v32 = vpop.permute.xlu0 %31
    %vm33 = vcmask 786112
    %34 = vst.msk [vmem:[#allocation0] sm:$0x1] %vm33, %v32
    %s35 = scalar_lea.vmem %s0, 10
    %v36 = vld [vmem:[%s35] sm:$0x1]
    %37 = vrot.lane.b32.xlu0 %v36, 80
    %v38 = vpop.permute.xlu0 %37
    %vm39 = vcmask 720512
    %40 = vst.msk [vmem:[#allocation0] sm:$0x1] %vm39, %v38
    %s41 = scalar_lea.vmem %s0, 9
    %v42 = vld [vmem:[%s41] sm:$0x1]
    %43 = vrot.lane.b32.xlu0 %v42, 72
    %v44 = vpop.permute.xlu0 %43
    %vm45 = vcmask 654912
    %46 = vst.msk [vmem:[#allocation0] sm:$0x1] %vm45, %v44
    %s47 = scalar_lea.vmem %s0, 8
    %v48 = vld [vmem:[%s47] sm:$0x1]
    %49 = vrot.lane.b32.xlu0 %v48, 64
    %v50 = vpop.permute.xlu0 %49
    %vm51 = vcmask 589312
    %52 = vst.msk [vmem:[#allocation0] sm:$0x1] %vm51, %v50
    %s53 = scalar_lea.vmem %s0, 7
    %v54 = vld [vmem:[%s53] sm:$0x1]
    %55 = vrot.lane.b32.xlu0 %v54, 56
    %v56 = vpop.permute.xlu0 %55
    %vm57 = vcmask 523712
    %58 = vst.msk [vmem:[#allocation0] sm:$0x1] %vm57, %v56
    %s59 = scalar_lea.vmem %s0, 6
    %v60 = vld [vmem:[%s59] sm:$0x1]
    %61 = vrot.lane.b32.xlu0 %v60, 48
    %v62 = vpop.permute.xlu0 %61
    %vm63 = vcmask 458112
    %64 = vst.msk [vmem:[#allocation0] sm:$0x1] %vm63, %v62
    %s65 = scalar_lea.vmem %s0, 5
    %v66 = vld [vmem:[%s65] sm:$0x1]
    %67 = vrot.lane.b32.xlu0 %v66, 40
    %v68 = vpop.permute.xlu0 %67
    %vm69 = vcmask 392512
    %70 = vst.msk [vmem:[#allocation0] sm:$0x1] %vm69, %v68
    %s71 = scalar_lea.vmem %s0, 4
    %v72 = vld [vmem:[%s71] sm:$0x1]
    %73 = vrot.lane.b32.xlu0 %v72, 32
    %v74 = vpop.permute.xlu0 %73
    %vm75 = vcmask 326912
    %76 = vst.msk [vmem:[#allocation0] sm:$0x1] %vm75, %v74
    %s77 = scalar_lea.vmem %s0, 3
    %v78 = vld [vmem:[%s77] sm:$0x1]
    %79 = vrot.lane.b32.xlu0 %v78, 24
    %v80 = vpop.permute.xlu0 %79
    %vm81 = vcmask 261312
    %82 = vst.msk [vmem:[#allocation0] sm:$0x1] %vm81, %v80
    %s83 = scalar_lea.vmem %s0, 2
    %v84 = vld [vmem:[%s83] sm:$0x1]
    %85 = vrot.lane.b32.xlu0 %v84, 16
    %v86 = vpop.permute.xlu0 %85
    %vm87 = vcmask 195712
    %88 = vst.msk [vmem:[#allocation0] sm:$0x1] %vm87, %v86
    %s89 = scalar_lea.vmem %s0, 1
    %v90 = vld [vmem:[%s89] sm:$0x1]
    %91 = vrot.lane.b32.xlu0 %v90, 8
    %v92 = vpop.permute.xlu0 %91
    %vm93 = vcmask 130112
    %94 = vst.msk [vmem:[#allocation0] sm:$0x1] %vm93, %v92
    %s96 = ssub.s32 2, 1
    %v97 = vld [vmem:[#allocation0] sm:%s96]
    %s99 = ssub.s32 2, 1
    %100 = vst [vmem:[%s1] sm:%s99] %v97

// kernel: neg.2
$region0: #{neg.2}
  #allocation2 [shape = 's32[1]{0}', space=sflag, size = 0x4, scoped, tag = 'scoped memory for neg.2']
  %s0 = inlined_call_operand.hbm [shape: f32[3,3,8,4], index: 0, kind: input, shape index: {}]
  %s1 = inlined_call_operand.vmem [shape: bf16[3,3,8,4], index: 1, kind: output, shape index: {}]
  $region1: #{neg.2} parent=0
    #allocation0 [shape = 'u8[18432]{0}', space=vmem, size = 0x4800, scoped, tag = 'operand span for operand 0']
    #allocation1 [shape = 's32[1]{0}', space=sflag, size = 0x4, scoped, tag = 'scoped memory for neg.2']
    %2 = vsyncpa [#allocation1], 0
    %4 = vsyncadd [#allocation1], 0
    %s5 = sshll.u32 %s0, 4
    %s6 = int_to_ptr.hbm [resolvable:$true] %s5
    %s7 = sshll.u32 [#allocation0], 4
    %s8 = int_to_ptr.vmem [resolvable:$true] %s7
    %13 = dma.hbm_to_vmem [thread:$0]  %s6, 576, %s8, [#allocation1], 64, 64, 4
    %15 = dma.done [#allocation1], 576
    %v16 = vld [vmem:[#allocation0] sm:$0xf]
    %17 = xla_tuple %v16
    %18 = xla_tuple %17
    %v19 = vxor.u32 %v16, 2147483648
    %20 = xla_tuple %v19
    %v21 = vpack.c.bf16 0.0, %v19
    %22 = vst [vmem:[%s1] sm:$0x3] %v21
    %s23 = scalar_lea.vmem [#allocation0], 12
    %v24 = vld [vmem:[%s23] sm:$0xf]
    %25 = xla_tuple %v24
    %26 = xla_tuple %25
    %v27 = vxor.u32 %v24, 2147483648
    %28 = xla_tuple %v27
    %s29 = scalar_lea.vmem %s1, 6
    %v30 = vpack.c.bf16 0.0, %v27
    %31 = vst [vmem:[%s29] sm:$0x3] %v30
    %s32 = scalar_lea.vmem [#allocation0], 24
    %v33 = vld [vmem:[%s32] sm:$0xf]
    %34 = xla_tuple %v33
    %35 = xla_tuple %34
    %v36 = vxor.u32 %v33, 2147483648
    %37 = xla_tuple %v36
    %s38 = scalar_lea.vmem %s1, 12
    %v39 = vpack.c.bf16 0.0, %v36
    %40 = vst [vmem:[%s38] sm:$0x3] %v39
    %s41 = scalar_lea.vmem [#allocation0], 4
    %v42 = vld [vmem:[%s41] sm:$0xf]
    %43 = xla_tuple %v42
    %44 = xla_tuple %43
    %v45 = vxor.u32 %v42, 2147483648
    %46 = xla_tuple %v45
    %s47 = scalar_lea.vmem %s1, 2
    %v48 = vpack.c.bf16 0.0, %v45
    %49 = vst [vmem:[%s47] sm:$0x3] %v48
    %s50 = scalar_lea.vmem [#allocation0], 16
    %v51 = vld [vmem:[%s50] sm:$0xf]
    %52 = xla_tuple %v51
    %53 = xla_tuple %52
    %v54 = vxor.u32 %v51, 2147483648
    %55 = xla_tuple %v54
    %s56 = scalar_lea.vmem %s1, 8
    %v57 = vpack.c.bf16 0.0, %v54
    %58 = vst [vmem:[%s56] sm:$0x3] %v57
    %s59 = scalar_lea.vmem [#allocation0], 28
    %v60 = vld [vmem:[%s59] sm:$0xf]
    %61 = xla_tuple %v60
    %62 = xla_tuple %61
    %v63 = vxor.u32 %v60, 2147483648
    %64 = xla_tuple %v63
    %s65 = scalar_lea.vmem %s1, 14
    %v66 = vpack.c.bf16 0.0, %v63
    %67 = vst [vmem:[%s65] sm:$0x3] %v66
    %s68 = scalar_lea.vmem [#allocation0], 8
    %v69 = vld [vmem:[%s68] sm:$0xf]
    %70 = xla_tuple %v69
    %71 = xla_tuple %70
    %v72 = vxor.u32 %v69, 2147483648
    %73 = xla_tuple %v72
    %s74 = scalar_lea.vmem %s1, 4
    %v75 = vpack.c.bf16 0.0, %v72
    %76 = vst [vmem:[%s74] sm:$0x3] %v75
    %s77 = scalar_lea.vmem [#allocation0], 20
    %v78 = vld [vmem:[%s77] sm:$0xf]
    %79 = xla_tuple %v78
    %80 = xla_tuple %79
    %v81 = vxor.u32 %v78, 2147483648
    %82 = xla_tuple %v81
    %s83 = scalar_lea.vmem %s1, 10
    %v84 = vpack.c.bf16 0.0, %v81
    %85 = vst [vmem:[%s83] sm:$0x3] %v84
    %s86 = scalar_lea.vmem [#allocation0], 32
    %v87 = vld [vmem:[%s86] sm:$0xf]
    %88 = xla_tuple %v87
    %89 = xla_tuple %88
    %v90 = vxor.u32 %v87, 2147483648
    %91 = xla_tuple %v90
    %s92 = scalar_lea.vmem %s1, 16
    %v93 = vpack.c.bf16 0.0, %v90
    %94 = vst [vmem:[%s92] sm:$0x3] %v93
    %95 = vsyncpa [#allocation1], 1

// kernel: neg.3
$region0: #{neg.3}
  #allocation2 [shape = 's32[1]{0}', space=sflag, size = 0x4, scoped, tag = 'scoped memory for neg.3']
  %s0 = inlined_call_operand.hbm [shape: f32[3,3,4,4], index: 0, kind: input, shape index: {}]
  %s1 = inlined_call_operand.vmem [shape: bf16[3,3,4,4], index: 1, kind: output, shape index: {}]
  $region1: #{neg.3} parent=0
    #allocation0 [shape = 'u8[18432]{0}', space=vmem, size = 0x4800, scoped, tag = 'operand span for operand 0']
    #allocation1 [shape = 's32[1]{0}', space=sflag, size = 0x4, scoped, tag = 'scoped memory for neg.3']
    %2 = vsyncpa [#allocation1], 0
    %4 = vsyncadd [#allocation1], 0
    %s5 = sshll.u32 %s0, 4
    %s6 = int_to_ptr.hbm [resolvable:$true] %s5
    %s7 = sshll.u32 [#allocation0], 4
    %s8 = int_to_ptr.vmem [resolvable:$true] %s7
    %13 = dma.hbm_to_vmem [thread:$0]  %s6, 576, %s8, [#allocation1], 64, 64, 4
    %15 = dma.done [#allocation1], 576
    %v16 = vld [vmem:[#allocation0] sm:$0xf]
    %17 = xla_tuple %v16
    %18 = xla_tuple %17
    %v19 = vxor.u32 %v16, 2147483648
    %20 = xla_tuple %v19
    %v21 = vpack.c.bf16 0.0, %v19
    %22 = vst [vmem:[%s1] sm:$0x3] %v21
    %s23 = scalar_lea.vmem [#allocation0], 12
    %v24 = vld [vmem:[%s23] sm:$0xf]
    %25 = xla_tuple %v24
    %26 = xla_tuple %25
    %v27 = vxor.u32 %v24, 2147483648
    %28 = xla_tuple %v27
    %s29 = scalar_lea.vmem %s1, 6
    %v30 = vpack.c.bf16 0.0, %v27
    %31 = vst [vmem:[%s29] sm:$0x3] %v30
    %s32 = scalar_lea.vmem [#allocation0], 24
    %v33 = vld [vmem:[%s32] sm:$0xf]
    %34 = xla_tuple %v33
    %35 = xla_tuple %34
    %v36 = vxor.u32 %v33, 2147483648
    %37 = xla_tuple %v36
    %s38 = scalar_lea.vmem %s1, 12
    %v39 = vpack.c.bf16 0.0, %v36
    %40 = vst [vmem:[%s38] sm:$0x3] %v39
    %s41 = scalar_lea.vmem [#allocation0], 4
    %v42 = vld [vmem:[%s41] sm:$0xf]
    %43 = xla_tuple %v42
    %44 = xla_tuple %43
    %v45 = vxor.u32 %v42, 2147483648
    %46 = xla_tuple %v45
    %s47 = scalar_lea.vmem %s1, 2
    %v48 = vpack.c.bf16 0.0, %v45
    %49 = vst [vmem:[%s47] sm:$0x3] %v48
    %s50 = scalar_lea.vmem [#allocation0], 16
    %v51 = vld [vmem:[%s50] sm:$0xf]
    %52 = xla_tuple %v51
    %53 = xla_tuple %52
    %v54 = vxor.u32 %v51, 2147483648
    %55 = xla_tuple %v54
    %s56 = scalar_lea.vmem %s1, 8
    %v57 = vpack.c.bf16 0.0, %v54
    %58 = vst [vmem:[%s56] sm:$0x3] %v57
    %s59 = scalar_lea.vmem [#allocation0], 28
    %v60 = vld [vmem:[%s59] sm:$0xf]
    %61 = xla_tuple %v60
    %62 = xla_tuple %61
    %v63 = vxor.u32 %v60, 2147483648
    %64 = xla_tuple %v63
    %s65 = scalar_lea.vmem %s1, 14
    %v66 = vpack.c.bf16 0.0, %v63
    %67 = vst [vmem:[%s65] sm:$0x3] %v66
    %s68 = scalar_lea.vmem [#allocation0], 8
    %v69 = vld [vmem:[%s68] sm:$0xf]
    %70 = xla_tuple %v69
    %71 = xla_tuple %70
    %v72 = vxor.u32 %v69, 2147483648
    %73 = xla_tuple %v72
    %s74 = scalar_lea.vmem %s1, 4
    %v75 = vpack.c.bf16 0.0, %v72
    %76 = vst [vmem:[%s74] sm:$0x3] %v75
    %s77 = scalar_lea.vmem [#allocation0], 20
    %v78 = vld [vmem:[%s77] sm:$0xf]
    %79 = xla_tuple %v78
    %80 = xla_tuple %79
    %v81 = vxor.u32 %v78, 2147483648
    %82 = xla_tuple %v81
    %s83 = scalar_lea.vmem %s1, 10
    %v84 = vpack.c.bf16 0.0, %v81
    %85 = vst [vmem:[%s83] sm:$0x3] %v84
    %s86 = scalar_lea.vmem [#allocation0], 32
    %v87 = vld [vmem:[%s86] sm:$0xf]
    %88 = xla_tuple %v87
    %89 = xla_tuple %88
    %v90 = vxor.u32 %v87, 2147483648
    %91 = xla_tuple %v90
    %s92 = scalar_lea.vmem %s1, 16
    %v93 = vpack.c.bf16 0.0, %v90
    %94 = vst [vmem:[%s92] sm:$0x3] %v93
    %95 = vsyncpa [#allocation1], 1

// kernel: custom-call.1
$region0: #{custom-call.1}
  %s0 = inlined_call_operand.hbm [shape: c64[2,4,16,16], index: 0, kind: input, shape index: {}]
  %s1 = inlined_call_operand.vmem [shape: f32[2,4,16,16], index: 1, kind: output, shape index: {}]
  %s2 = scalar_lea.hbm %s0, 128
  $region1: #{custom-call.1} parent=0
    #allocation0 [shape = 's32[1]{0}', space=sflag, size = 0x4, scoped, tag = 'scoped memory for custom-call.1']
    %3 = vsyncpa [#allocation0], 0
    %s5 = sshll.u32 %s2, 4
    %s6 = int_to_ptr.hbm [resolvable:$true] %s5
    %s7 = sshll.u32 %s1, 4
    %s8 = int_to_ptr.vmem [resolvable:$true] %s7
    %10 = dma.hbm_to_vmem [thread:$0]  %s6, 2048, %s8, [#allocation0]
    %12 = dma.done [#allocation0], 2048
    %13 = vsyncpa [#allocation0], 1

// kernel: custom-call
$region0: #{custom-call}
  %s0 = inlined_call_operand.hbm [shape: c64[2,4,16,16], index: 0, kind: input, shape index: {}]
  %s1 = inlined_call_operand.vmem [shape: f32[2,4,16,16], index: 1, kind: output, shape index: {}]
  $region1: #{custom-call} parent=0
    #allocation0 [shape = 's32[1]{0}', space=sflag, size = 0x4, scoped, tag = 'scoped memory for custom-call']
    %2 = vsyncpa [#allocation0], 0
    %s4 = sshll.u32 %s0, 4
    %s5 = int_to_ptr.hbm [resolvable:$true] %s4
    %s6 = sshll.u32 %s1, 4
    %s7 = int_to_ptr.vmem [resolvable:$true] %s6
    %9 = dma.hbm_to_vmem [thread:$0]  %s5, 2048, %s7, [#allocation0]
    %11 = dma.done [#allocation0], 2048
    %12 = vsyncpa [#allocation0], 1

// kernel: custom-call.3
$region0: #{custom-call.3}
  %s0 = inlined_call_operand.hbm [shape: c64[2,8,8,8], index: 0, kind: input, shape index: {}]
  %s1 = inlined_call_operand.vmem [shape: f32[2,8,8,8], index: 1, kind: output, shape index: {}]
  %s2 = scalar_lea.hbm %s0, 128
  $region1: #{custom-call.3} parent=0
    #allocation0 [shape = 's32[1]{0}', space=sflag, size = 0x4, scoped, tag = 'scoped memory for custom-call.3']
    %3 = vsyncpa [#allocation0], 0
    %s5 = sshll.u32 %s2, 4
    %s6 = int_to_ptr.hbm [resolvable:$true] %s5
    %s7 = sshll.u32 %s1, 4
    %s8 = int_to_ptr.vmem [resolvable:$true] %s7
    %10 = dma.hbm_to_vmem [thread:$0]  %s6, 2048, %s8, [#allocation0]
    %12 = dma.done [#allocation0], 2048
    %13 = vsyncpa [#allocation0], 1

// kernel: custom-call.2
$region0: #{custom-call.2}
  %s0 = inlined_call_operand.hbm [shape: c64[2,8,8,8], index: 0, kind: input, shape index: {}]
  %s1 = inlined_call_operand.vmem [shape: f32[2,8,8,8], index: 1, kind: output, shape index: {}]
  $region1: #{custom-call.2} parent=0
    #allocation0 [shape = 's32[1]{0}', space=sflag, size = 0x4, scoped, tag = 'scoped memory for custom-call.2']
    %2 = vsyncpa [#allocation0], 0
    %s4 = sshll.u32 %s0, 4
    %s5 = int_to_ptr.hbm [resolvable:$true] %s4
    %s6 = sshll.u32 %s1, 4
    %s7 = int_to_ptr.vmem [resolvable:$true] %s6
    %9 = dma.hbm_to_vmem [thread:$0]  %s5, 2048, %s7, [#allocation0]
    %11 = dma.done [#allocation0], 2048
    %12 = vsyncpa [#allocation0], 1

// kernel: cplx_up_forward.2
$region0: #{cplx_up_forward.2}
  #allocation0 [shape = 'u32[]', space=smem, size = 0x4, offset = 0x4, fixed_abs, tag = 'smem constant byte address 0x4 - core index']
  #allocation1 [shape = 'u32[72,128]{1,0:T(1,128)}', space=vmem, size = 0x9000, scoped, tag = 'internal scratch']
  %s0 = inlined_call_operand.vmem [shape: bf16[32,64], index: 0, kind: input, shape index: {}]
  %s1 = inlined_call_operand.vmem [shape: bf16[64,128], index: 1, kind: input, shape index: {}]
  %s2 = inlined_call_operand.vmem [shape: f32[1,128], index: 2, kind: input, shape index: {}]
  %s3 = inlined_call_operand.vmem [shape: bf16[32,128], index: 3, kind: output, shape index: {}]
  %s4 = sld [smem:[#allocation0]]
  $region45: #{cplx_up_forward.2} parent=0
    _
  %s6 = ssub.s32 1, %s4
  %s7 = scalar_select 0, %s6, %s4
  loop: start=0, step=1, limit=6
  $region2: #{cplx_up_forward.2} parent=0 // loop_pre_header
    _
  $region3: #{cplx_up_forward.2} parent=0 // loop_header
    %s9 = sphi 0, %s13
    %p10 = scmp.ge.s32.totalorder %s9, 6
    %s19 = sphi 0, %s21
    %s22 = sphi 0, %s19
    %s23 = sphi 0, %s22
    %s39 = sphi 0, %s23
    %s43 = sphi 0, %s43
    %s45 = sphi 0, %s43
    %s46 = sphi 0, %s45
    %s60 = sphi 0, %s46
    %s64 = sphi 0, %s64
    %s66 = sphi 0, %s64
    %s67 = sphi 0, %s66
    %s81 = sphi 0, %s67
    %s87 = sphi 0, %s89
    %s90 = sphi 0, %s87
    %s91 = sphi 0, %s90
    %s107 = sphi 0, %s91
  $region4: #{cplx_up_forward.2} parent=0 // loop_header_branch
    %12 = sbr.rel (%p10) target = $region8
  $region5: #{cplx_up_forward.2} parent=0 // loop_body
    %s14 = ssub.s32 %s9, 1
    %s15 = ssub.s32 %s9, 2
    %s16 = sadd.s32 %s9, 1
    %s17 = ssub.s32 %s9, %s16
    %p18 = scmp.eq.s32.totalorder %s17, 0
    %s20 = sadd.s32 %s19, 1
    %s21 = scalar_select %p18, %s19, %s20
    %p24 = pneg %p18
    %p25 = scmp.eq.s32.totalorder %s9, 3
    %p26 = por %p24, %p25
    %p27 = scmp.ne.s32.totalorder %s19, %s22
    %p28 = scmp.eq.s32.totalorder %s9, 0
    %p29 = por %p27, %p28
    %p30 = scmp.ne.s32.totalorder %s19, %s22
    %p31 = scmp.eq.s32.totalorder %s14, 3
    %p32 = por %p30, %p31
    %p33 = scmp.ne.s32.totalorder %s22, %s23
    %p34 = scmp.eq.s32.totalorder %s14, 0
    %p35 = por %p33, %p34
    %p36 = scmp.ne.s32.totalorder %s22, %s23
    %p37 = scmp.eq.s32.totalorder %s15, 3
    %p38 = por %p36, %p37
    %p40 = scmp.ne.s32.totalorder %s23, %s39
    %p41 = scmp.eq.s32.totalorder %s15, 0
    %p42 = por %p40, %p41
    %s44 = sadd.s32 %s43, 1
    %p47 = scmp.eq.s32.totalorder %s9, 3
    %p48 = scmp.ne.s32.totalorder %s43, %s45
    %p49 = scmp.eq.s32.totalorder %s9, 0
    %p50 = por %p48, %p49
    %p51 = scmp.ne.s32.totalorder %s43, %s45
    %p52 = scmp.eq.s32.totalorder %s14, 3
    %p53 = por %p51, %p52
    %p54 = scmp.ne.s32.totalorder %s45, %s46
    %p55 = scmp.eq.s32.totalorder %s14, 0
    %p56 = por %p54, %p55
    %p57 = scmp.ne.s32.totalorder %s45, %s46
    %p58 = scmp.eq.s32.totalorder %s15, 3
    %p59 = por %p57, %p58
    %p61 = scmp.ne.s32.totalorder %s46, %s60
    %p62 = scmp.eq.s32.totalorder %s15, 0
    %p63 = por %p61, %p62
    %s65 = sadd.s32 %s64, 1
    %p68 = scmp.eq.s32.totalorder %s9, 3
    %p69 = scmp.ne.s32.totalorder %s64, %s66
    %p70 = scmp.eq.s32.totalorder %s9, 0
    %p71 = por %p69, %p70
    %p72 = scmp.ne.s32.totalorder %s64, %s66
    %p73 = scmp.eq.s32.totalorder %s14, 3
    %p74 = por %p72, %p73
    %p75 = scmp.ne.s32.totalorder %s66, %s67
    %p76 = scmp.eq.s32.totalorder %s14, 0
    %p77 = por %p75, %p76
    %p78 = scmp.ne.s32.totalorder %s66, %s67
    %p79 = scmp.eq.s32.totalorder %s15, 3
    %p80 = por %p78, %p79
    %p82 = scmp.ne.s32.totalorder %s67, %s81
    %p83 = scmp.eq.s32.totalorder %s15, 0
    %p84 = por %p82, %p83
    %s85 = ssub.s32 %s9, %s16
    %p86 = scmp.eq.s32.totalorder %s85, 0
    %s88 = sadd.s32 %s87, 1
    %s89 = scalar_select %p86, %s87, %s88
    %p92 = pneg %p86
    %p93 = scmp.eq.s32.totalorder %s9, 3
    %p94 = por %p92, %p93
    %p95 = scmp.ne.s32.totalorder %s87, %s90
    %p96 = scmp.eq.s32.totalorder %s9, 0
    %p97 = por %p95, %p96
    %p98 = scmp.ne.s32.totalorder %s87, %s90
    %p99 = scmp.eq.s32.totalorder %s14, 3
    %p100 = por %p98, %p99
    %p101 = scmp.ne.s32.totalorder %s90, %s91
    %p102 = scmp.eq.s32.totalorder %s14, 0
    %p103 = por %p101, %p102
    %p104 = scmp.ne.s32.totalorder %s90, %s91
    %p105 = scmp.eq.s32.totalorder %s15, 3
    %p106 = por %p104, %p105
    %p108 = scmp.ne.s32.totalorder %s91, %s107
    %p109 = scmp.eq.s32.totalorder %s15, 0
    %p110 = por %p108, %p109
    %p111 = scmp.le.s32.totalorder 1, %s9
    %p112 = scmp.lt.s32.totalorder %s9, 5
    %p113 = pnand %p111, %p112
    %p114 = pneg %p113
    // Predicated region
    $region9: #{cplx_up_forward.2} parent=5 // pred_check
      _
    $region10: #{cplx_up_forward.2} parent=5 // pred_check_branch
      %116 = sbr.rel (%p113) target = $region12
    $region11: #{cplx_up_forward.2} parent=5 // pred_region
      %s117 = ssub.s32 %s9, 1
      // Predicated region
      $region13: #{cplx_up_forward.2} parent=11 // pred_check
        %p118 = pneg %p56
      $region14: #{cplx_up_forward.2} parent=11 // pred_check_branch
        %120 = sbr.rel (%p118) target = $region16
      $region15: #{cplx_up_forward.2} parent=11 // pred_region
        _
      $region16: #{cplx_up_forward.2} parent=11 // pred_fallthru
        _
      // Predicated region
      $region17: #{cplx_up_forward.2} parent=11 // pred_check
        %p121 = pneg %p77
      $region18: #{cplx_up_forward.2} parent=11 // pred_check_branch
        %123 = sbr.rel (%p121) target = $region20
      $region19: #{cplx_up_forward.2} parent=11 // pred_region
        _
      $region20: #{cplx_up_forward.2} parent=11 // pred_fallthru
        _
    $region12: #{cplx_up_forward.2} parent=5 // pred_fallthru
      _
    %p124 = scmp.lt.s32.totalorder %s9, 4
    // Predicated region
    $region21: #{cplx_up_forward.2} parent=5 // pred_check
      %p125 = pneg %p124
    $region22: #{cplx_up_forward.2} parent=5 // pred_check_branch
      %127 = sbr.rel (%p125) target = $region24
    $region23: #{cplx_up_forward.2} parent=5 // pred_region
      // Predicated region
      $region25: #{cplx_up_forward.2} parent=23 // pred_check
        %p128 = pneg %p29
      $region26: #{cplx_up_forward.2} parent=23 // pred_check_branch
        %130 = sbr.rel (%p128) target = $region28
      $region27: #{cplx_up_forward.2} parent=23 // pred_region
        %p131 = scmp.lt.s32.totalorder %s9, 3
        %s132 = scalar_select %p131, %s9, 3
        %s133 = smul.addr %s132, 4
        %s134 = scalar_lea.vmem %s0, %s133
      $region28: #{cplx_up_forward.2} parent=23 // pred_fallthru
        _
    $region24: #{cplx_up_forward.2} parent=5 // pred_fallthru
      _
    %p135 = scmp.le.s32.totalorder 1, %s9
    %p136 = scmp.lt.s32.totalorder %s9, 5
    %p137 = pnand %p135, %p136
    %p138 = pneg %p137
    // Predicated region
    $region29: #{cplx_up_forward.2} parent=5 // pred_check
      _
    $region30: #{cplx_up_forward.2} parent=5 // pred_check_branch
      %140 = sbr.rel (%p137) target = $region32
    $region31: #{cplx_up_forward.2} parent=5 // pred_region
      %s141 = ssub.s32 %s9, 1
      %p142 = scmp.lt.s32.totalorder %s14, 3
      %s143 = scalar_select %p142, %s14, 3
      %s144 = smul.addr %s143, 4
      %s145 = scalar_lea.vmem %s0, %s144
      %p146 = pneg %p35
      %p147 = pneg %p32
      %p148 = pneg %p56
      %p149 = pneg %p53
      %p150 = pneg %p77
      %p151 = pneg %p74
      %p152 = pneg %p103
      %p153 = pneg %p100
      %p154 = scmp.lt.s32.totalorder %s14, 3
      %s155 = scalar_select %p154, %s14, 3
      %s156 = smul.addr %s155, 4
      %s157 = scalar_lea.vmem %s3, %s156
      %p158 = scmp.lt.s32.totalorder %s14, 3
      %s159 = scalar_select %p158, %s14, 3
      %s160 = smul.addr %s159, 4
      %s161 = scalar_lea.vmem %s0, %s160
      %p162 = scmp.lt.s32.totalorder %s14, 3
      %s163 = scalar_select %p162, %s14, 3
      %s164 = smul.addr %s163, 4
      %s165 = scalar_lea.vmem %s3, %s164
      %v167 = vld [vmem:[%s161] sm:$0xf]
      %v168 = vld [vmem:[%s1] sm:$0xf]
      %v169 = vld [vmem:[%s1 + $0x4] sm:$0xf]
      %v170 = vld [vmem:[%s1 + $0x8] sm:$0xf]
      %v171 = vld [vmem:[%s1 + $0xc] sm:$0xf]
      %v172 = vld [vmem:[%s1 + $0x10] sm:$0xf]
      %v173 = vld [vmem:[%s1 + $0x14] sm:$0xf]
      %v174 = vld [vmem:[%s1 + $0x18] sm:$0xf]
      %v175 = vld [vmem:[%s1 + $0x1c] sm:$0xf]
      %v176 = vld [vmem:[%s2] sm:$0x1]
      %v178 = vperm.slane %v176, 0
      %v188 = vunpack.c.l.b16 %v168
      %v189 = vunpack.c.l.b16 %v169
      %v190 = vunpack.c.l.b16 %v170
      %v191 = vunpack.c.l.b16 %v171
      %v192 = vunpack.c.l.b16 %v172
      %v193 = vunpack.c.l.b16 %v173
      %v194 = vunpack.c.l.b16 %v174
      %v195 = vunpack.c.l.b16 %v175
      %v196 = vpack.c.b16 %v189, %v188
      %v197 = vpack.c.b16 %v191, %v190
      %v198 = vpack.c.b16 %v193, %v192
      %v199 = vpack.c.b16 %v195, %v194
      %vm204 = vcmask 523264
      %v206 = vsel %vm204, %v167, 0
      %208 = vmatpush.bf16.msra.mxu0 0
      %209 = vmatpush.bf16.msra.mxu0 0
      %210 = vmatpush.bf16.msra.mxu0 0
      %211 = vmatpush.bf16.msra.mxu0 0
      %212 = vmatpush.bf16.msra.mxu0 %v199
      %213 = vmatpush.bf16.msra.mxu0 %v198
      %214 = vmatpush.bf16.msra.mxu0 %v197
      %215 = vmatpush.bf16.msra.mxu0 %v196
      %216 = vmatmul.bf16.gmra.mxu0 %v206
      %v217 = vpop.f32.mrf.mxu0
      %v218 = vadd.f32 %v178, %v217
      %v219 = vpop.f32.mrf.mxu0
      %220 = vdwg.mxu0
      %v221 = vpack.c.bf16 %v218, %v218
      %222 = vst [vmem:[%s165] sm:$0xf] %v221
      %p223 = scmp.lt.s32.totalorder %s14, 3
      %s224 = scalar_select %p223, %s14, 3
      %s225 = smul.addr %s224, 4
      %s226 = scalar_lea.vmem %s3, %s225
      // Predicated region
      $region33: #{cplx_up_forward.2} parent=31 // pred_check
        %p227 = pneg %p100
      $region34: #{cplx_up_forward.2} parent=31 // pred_check_branch
        %229 = sbr.rel (%p227) target = $region36
      $region35: #{cplx_up_forward.2} parent=31 // pred_region
        _
      $region36: #{cplx_up_forward.2} parent=31 // pred_fallthru
        _
    $region32: #{cplx_up_forward.2} parent=5 // pred_fallthru
      _
    %p230 = scmp.le.s32.totalorder 2, %s9
    // Predicated region
    $region37: #{cplx_up_forward.2} parent=5 // pred_check
      %p231 = pneg %p230
    $region38: #{cplx_up_forward.2} parent=5 // pred_check_branch
      %233 = sbr.rel (%p231) target = $region40
    $region39: #{cplx_up_forward.2} parent=5 // pred_region
      %s234 = ssub.s32 %s9, 2
      // Predicated region
      $region41: #{cplx_up_forward.2} parent=39 // pred_check
        %p235 = pneg %p106
      $region42: #{cplx_up_forward.2} parent=39 // pred_check_branch
        %237 = sbr.rel (%p235) target = $region44
      $region43: #{cplx_up_forward.2} parent=39 // pred_region
        %p238 = scmp.lt.s32.totalorder %s15, 3
        %s239 = scalar_select %p238, %s15, 3
        %s240 = smul.addr %s239, 4
        %s241 = scalar_lea.vmem %s3, %s240
      $region44: #{cplx_up_forward.2} parent=39 // pred_fallthru
        _
    $region40: #{cplx_up_forward.2} parent=5 // pred_fallthru
      _
  $region6: #{cplx_up_forward.2} parent=0 // loop_footer
    %s13 = sadd.s32 1, %s9
  $region7: #{cplx_up_forward.2} parent=0 // loop_footer_branch
    %8 = sbr.rel target = $region3
  $region8: #{cplx_up_forward.2} parent=0 // loop_exit
    _

// kernel: cplx_up_forward.3
$region0: #{cplx_up_forward.3}
  #allocation0 [shape = 'u32[]', space=smem, size = 0x4, offset = 0x4, fixed_abs, tag = 'smem constant byte address 0x4 - core index']
  #allocation1 [shape = 'u32[72,128]{1,0:T(1,128)}', space=vmem, size = 0x9000, scoped, tag = 'internal scratch']
  #allocation2 [shape = 'f32[32,128]{1,0:T(8,128)}', space=vmem, size = 0x4000, scoped, tag = 'scratch operand']
  #allocation3 [shape = 'bf16[56,128]{1,0:T(8,128)(2,1)}', space=vmem, size = 0x3800, scoped, tag = 'scratch operand']
  %s0 = inlined_call_operand.vmem [shape: bf16[56,256], index: 0, kind: input, shape index: {}]
  %s1 = inlined_call_operand.vmem [shape: bf16[3,256,128], index: 1, kind: input, shape index: {}]
  %s2 = inlined_call_operand.vmem [shape: f32[1,128], index: 2, kind: input, shape index: {}]
  %s3 = inlined_call_operand.vmem [shape: f32[1,128], index: 3, kind: input, shape index: {}]
  %s4 = inlined_call_operand.vmem [shape: f32[1,128], index: 4, kind: input, shape index: {}]
  %s5 = inlined_call_operand.vmem [shape: bf16[3,128,128], index: 5, kind: input, shape index: {}]
  %s6 = inlined_call_operand.vmem [shape: f32[1,128], index: 6, kind: input, shape index: {}]
  %s7 = inlined_call_operand.vmem [shape: f32[1,128], index: 7, kind: input, shape index: {}]
  %s8 = inlined_call_operand.vmem [shape: f32[1,128], index: 8, kind: input, shape index: {}]
  %s9 = inlined_call_operand.vmem [shape: f32[128,128], index: 9, kind: input, shape index: {}]
  %s10 = inlined_call_operand.vmem [shape: f32[32,128], index: 10, kind: output, shape index: {}]
  %s11 = sld [smem:[#allocation0]]
  $region50: #{cplx_up_forward.3} parent=0
    _
  %s13 = ssub.s32 1, %s11
  %s14 = scalar_select 0, %s13, %s11
  // Predicated region
  $region2: #{cplx_up_forward.3} parent=0 // pred_check
    _
  $region3: #{cplx_up_forward.3} parent=0 // pred_check_branch
    %16 = sbr.rel (0) target = $region5
  $region4: #{cplx_up_forward.3} parent=0 // pred_region
    _
  $region5: #{cplx_up_forward.3} parent=0 // pred_fallthru
    _
  // Predicated region
  $region6: #{cplx_up_forward.3} parent=0 // pred_check
    _
  $region7: #{cplx_up_forward.3} parent=0 // pred_check_branch
    %18 = sbr.rel (0) target = $region9
  $region8: #{cplx_up_forward.3} parent=0 // pred_region
    _
  $region9: #{cplx_up_forward.3} parent=0 // pred_fallthru
    _
  // Predicated region
  $region10: #{cplx_up_forward.3} parent=0 // pred_check
    _
  $region11: #{cplx_up_forward.3} parent=0 // pred_check_branch
    %20 = sbr.rel (0) target = $region13
  $region12: #{cplx_up_forward.3} parent=0 // pred_region
    _
  $region13: #{cplx_up_forward.3} parent=0 // pred_fallthru
    _
  // Predicated region
  $region14: #{cplx_up_forward.3} parent=0 // pred_check
    _
  $region15: #{cplx_up_forward.3} parent=0 // pred_check_branch
    %22 = sbr.rel (0) target = $region17
  $region16: #{cplx_up_forward.3} parent=0 // pred_region
    _
  $region17: #{cplx_up_forward.3} parent=0 // pred_fallthru
    _
  // Predicated region
  $region18: #{cplx_up_forward.3} parent=0 // pred_check
    _
  $region19: #{cplx_up_forward.3} parent=0 // pred_check_branch
    %24 = sbr.rel (0) target = $region21
  $region20: #{cplx_up_forward.3} parent=0 // pred_region
    _
  $region21: #{cplx_up_forward.3} parent=0 // pred_fallthru
    _
  // Predicated region
  $region22: #{cplx_up_forward.3} parent=0 // pred_check
    _
  $region23: #{cplx_up_forward.3} parent=0 // pred_check_branch
    %26 = sbr.rel (0) target = $region25
  $region24: #{cplx_up_forward.3} parent=0 // pred_region
    _
  $region25: #{cplx_up_forward.3} parent=0 // pred_fallthru
    _
  // Predicated region
  $region26: #{cplx_up_forward.3} parent=0 // pred_check
    _
  $region27: #{cplx_up_forward.3} parent=0 // pred_check_branch
    %28 = sbr.rel (0) target = $region29
  $region28: #{cplx_up_forward.3} parent=0 // pred_region
    _
  $region29: #{cplx_up_forward.3} parent=0 // pred_fallthru
    _
  // Predicated region
  $region30: #{cplx_up_forward.3} parent=0 // pred_check
    _
  $region31: #{cplx_up_forward.3} parent=0 // pred_check_branch
    %30 = sbr.rel (0) target = $region33
  $region32: #{cplx_up_forward.3} parent=0 // pred_region
    _
  $region33: #{cplx_up_forward.3} parent=0 // pred_fallthru
    _
  // Predicated region
  $region34: #{cplx_up_forward.3} parent=0 // pred_check
    _
  $region35: #{cplx_up_forward.3} parent=0 // pred_check_branch
    %32 = sbr.rel (0) target = $region37
  $region36: #{cplx_up_forward.3} parent=0 // pred_region
    _
  $region37: #{cplx_up_forward.3} parent=0 // pred_fallthru
    _
  // Predicated region
  $region38: #{cplx_up_forward.3} parent=0 // pred_check
    _
  $region39: #{cplx_up_forward.3} parent=0 // pred_check_branch
    %34 = sbr.rel (0) target = $region41
  $region40: #{cplx_up_forward.3} parent=0 // pred_region
    _
  $region41: #{cplx_up_forward.3} parent=0 // pred_fallthru
    _
  %v36 = vld [vmem:[%s0] sm:$0xff]
  %v37 = vld [vmem:[%s0 + $0x8] sm:$0xff]
  %v38 = vld [vmem:[%s0 + $0x10] sm:$0xff]
  %v39 = vld [vmem:[%s0 + $0x18] sm:$0xff]
  %v40 = vld [vmem:[%s0 + $0x20] sm:$0xff]
  %v41 = vld [vmem:[%s0 + $0x28] sm:$0xff]
  %v42 = vld [vmem:[%s0 + $0x30] sm:$0xff]
  %v43 = vld [vmem:[%s2] sm:$0x1]
  %v45 = vperm.slane %v43, 0
  %47 = vst [vmem:[#allocation2] sm:$0xff] %v45
  %48 = vst [vmem:[#allocation2 + $0x8] sm:$0xff] %v45
  %49 = vst [vmem:[#allocation2 + $0x10] sm:$0xff] %v45
  %50 = vst [vmem:[#allocation2 + $0x18] sm:$0xff] %v45
  %v51 = vld [vmem:[%s1] sm:$0xf]
  %v52 = vld [vmem:[%s1 + $0x4] sm:$0xf]
  %v53 = vld [vmem:[%s1 + $0x8] sm:$0xf]
  %v54 = vld [vmem:[%s1 + $0xc] sm:$0xf]
  %v55 = vld [vmem:[%s1 + $0x10] sm:$0xf]
  %v56 = vld [vmem:[%s1 + $0x14] sm:$0xf]
  %v57 = vld [vmem:[%s1 + $0x18] sm:$0xf]
  %v58 = vld [vmem:[%s1 + $0x1c] sm:$0xf]
  %v59 = vld [vmem:[%s1 + $0x20] sm:$0xf]
  %v60 = vld [vmem:[%s1 + $0x24] sm:$0xf]
  %v61 = vld [vmem:[%s1 + $0x28] sm:$0xf]
  %v62 = vld [vmem:[%s1 + $0x2c] sm:$0xf]
  %v63 = vld [vmem:[%s1 + $0x30] sm:$0xf]
  %v64 = vld [vmem:[%s1 + $0x34] sm:$0xf]
  %v65 = vld [vmem:[%s1 + $0x38] sm:$0xf]
  %v66 = vld [vmem:[%s1 + $0x3c] sm:$0xf]
  %v67 = vld [vmem:[%s1 + $0x40] sm:$0xf]
  %v68 = vld [vmem:[%s1 + $0x44] sm:$0xf]
  %v69 = vld [vmem:[%s1 + $0x48] sm:$0xf]
  %v70 = vld [vmem:[%s1 + $0x4c] sm:$0xf]
  %v71 = vld [vmem:[%s1 + $0x50] sm:$0xf]
  %v72 = vld [vmem:[%s1 + $0x54] sm:$0xf]
  %v73 = vld [vmem:[%s1 + $0x58] sm:$0xf]
  %v74 = vld [vmem:[%s1 + $0x5c] sm:$0xf]
  %v75 = vld [vmem:[%s1 + $0x60] sm:$0xf]
  %v76 = vld [vmem:[%s1 + $0x64] sm:$0xf]
  %v77 = vld [vmem:[%s1 + $0x68] sm:$0xf]
  %v78 = vld [vmem:[%s1 + $0x6c] sm:$0xf]
  %v79 = vld [vmem:[%s1 + $0x70] sm:$0xf]
  %v80 = vld [vmem:[%s1 + $0x74] sm:$0xf]
  %v81 = vld [vmem:[%s1 + $0x78] sm:$0xf]
  %v82 = vld [vmem:[%s1 + $0x7c] sm:$0xf]
  %v90 = vunpack.c.l.b16 %v36
  %v91 = vunpack.c.h.b16 %v36
  %v92 = vunpack.c.l.b16 %v37
  %v93 = vunpack.c.h.b16 %v37
  %v94 = vunpack.c.l.b16 %v38
  %v95 = vunpack.c.h.b16 %v38
  %v96 = vunpack.c.l.b16 %v39
  %v97 = vunpack.c.h.b16 %v39
  %v98 = vunpack.c.l.b16 %v40
  %v99 = vunpack.c.h.b16 %v40
  %v100 = vunpack.c.l.b16 %v41
  %v101 = vunpack.c.h.b16 %v41
  %v102 = vunpack.c.l.b16 %v42
  %v103 = vunpack.c.h.b16 %v42
  %v104 = vpack.c.b16 %v92, %v90
  %v105 = vpack.c.b16 %v93, %v91
  %v106 = vpack.c.b16 %v96, %v94
  %v107 = vpack.c.b16 %v97, %v95
  %v108 = vpack.c.b16 %v100, %v98
  %v109 = vpack.c.b16 %v101, %v99
  %v110 = vpack.c.b16 %v102, %v102
  %v111 = vpack.c.b16 %v103, %v103
  %v152 = vunpack.c.l.b16 %v51
  %v153 = vunpack.c.l.b16 %v52
  %v154 = vunpack.c.l.b16 %v53
  %v155 = vunpack.c.l.b16 %v54
  %v156 = vunpack.c.l.b16 %v55
  %v157 = vunpack.c.l.b16 %v56
  %v158 = vunpack.c.l.b16 %v57
  %v159 = vunpack.c.l.b16 %v58
  %v160 = vunpack.c.l.b16 %v59
  %v161 = vunpack.c.l.b16 %v60
  %v162 = vunpack.c.l.b16 %v61
  %v163 = vunpack.c.l.b16 %v62
  %v164 = vunpack.c.l.b16 %v63
  %v165 = vunpack.c.l.b16 %v64
  %v166 = vunpack.c.l.b16 %v65
  %v167 = vunpack.c.l.b16 %v66
  %v168 = vunpack.c.l.b16 %v67
  %v169 = vunpack.c.l.b16 %v68
  %v170 = vunpack.c.l.b16 %v69
  %v171 = vunpack.c.l.b16 %v70
  %v172 = vunpack.c.l.b16 %v71
  %v173 = vunpack.c.l.b16 %v72
  %v174 = vunpack.c.l.b16 %v73
  %v175 = vunpack.c.l.b16 %v74
  %v176 = vunpack.c.l.b16 %v75
  %v177 = vunpack.c.l.b16 %v76
  %v178 = vunpack.c.l.b16 %v77
  %v179 = vunpack.c.l.b16 %v78
  %v180 = vunpack.c.l.b16 %v79
  %v181 = vunpack.c.l.b16 %v80
  %v182 = vunpack.c.l.b16 %v81
  %v183 = vunpack.c.l.b16 %v82
  %v184 = vpack.c.b16 %v153, %v152
  %v185 = vpack.c.b16 %v155, %v154
  %v186 = vpack.c.b16 %v157, %v156
  %v187 = vpack.c.b16 %v159, %v158
  %v188 = vpack.c.b16 %v161, %v160
  %v189 = vpack.c.b16 %v163, %v162
  %v190 = vpack.c.b16 %v165, %v164
  %v191 = vpack.c.b16 %v167, %v166
  %v192 = vpack.c.b16 %v169, %v168
  %v193 = vpack.c.b16 %v171, %v170
  %v194 = vpack.c.b16 %v173, %v172
  %v195 = vpack.c.b16 %v175, %v174
  %v196 = vpack.c.b16 %v177, %v176
  %v197 = vpack.c.b16 %v179, %v178
  %v198 = vpack.c.b16 %v181, %v180
  %v199 = vpack.c.b16 %v183, %v182
  %216 = vmatpush.bf16.msra.mxu0 %v191
  %217 = vmatpush.bf16.msra.mxu0 %v190
  %218 = vmatpush.bf16.msra.mxu0 %v189
  %219 = vmatpush.bf16.msra.mxu0 %v188
  %220 = vmatpush.bf16.msra.mxu0 %v187
  %221 = vmatpush.bf16.msra.mxu0 %v186
  %222 = vmatpush.bf16.msra.mxu0 %v185
  %223 = vmatpush.bf16.msra.mxu0 %v184
  %224 = vmatmul.bf16.gmra.mxu0 %v104
  %v225 = vpop.f32.mrf.mxu0
  %v226 = vadd.f32 0.0, %v225
  %v227 = vpop.f32.mrf.mxu0
  %v228 = vadd.f32 0.0, %v227
  %229 = vmatmul.bf16.gmra.mxu0 %v106
  %v230 = vpop.f32.mrf.mxu0
  %v231 = vadd.f32 0.0, %v230
  %v232 = vpop.f32.mrf.mxu0
  %v233 = vadd.f32 0.0, %v232
  %234 = vmatmul.bf16.gmra.mxu0 %v108
  %v235 = vpop.f32.mrf.mxu0
  %v236 = vadd.f32 0.0, %v235
  %v237 = vpop.f32.mrf.mxu0
  %v238 = vadd.f32 0.0, %v237
  %239 = vmatmul.bf16.gmra.mxu0 %v110
  %v240 = vpop.f32.mrf.mxu0
  %v241 = vpop.f32.mrf.mxu0
  %242 = vdwg.mxu0
  %243 = vmatpush.bf16.msra.mxu0 %v199
  %244 = vmatpush.bf16.msra.mxu0 %v198
  %245 = vmatpush.bf16.msra.mxu0 %v197
  %246 = vmatpush.bf16.msra.mxu0 %v196
  %247 = vmatpush.bf16.msra.mxu0 %v195
  %248 = vmatpush.bf16.msra.mxu0 %v194
  %249 = vmatpush.bf16.msra.mxu0 %v193
  %250 = vmatpush.bf16.msra.mxu0 %v192
  %251 = vmatmul.bf16.gmra.mxu0 %v105
  %v252 = vpop.f32.mrf.mxu0
  %v253 = vadd.f32 %v226, %v252
  %v254 = vpop.f32.mrf.mxu0
  %v255 = vadd.f32 %v228, %v254
  %256 = vmatmul.bf16.gmra.mxu0 %v107
  %v257 = vpop.f32.mrf.mxu0
  %v258 = vadd.f32 %v231, %v257
  %v259 = vpop.f32.mrf.mxu0
  %v260 = vadd.f32 %v233, %v259
  %261 = vmatmul.bf16.gmra.mxu0 %v109
  %v262 = vpop.f32.mrf.mxu0
  %v263 = vadd.f32 %v236, %v262
  %v264 = vpop.f32.mrf.mxu0
  %v265 = vadd.f32 %v238, %v264
  %266 = vmatmul.bf16.gmra.mxu0 %v111
  %v267 = vpop.f32.mrf.mxu0
  %v268 = vpop.f32.mrf.mxu0
  %269 = vdwg.mxu0
  %v270 = vld [vmem:[#allocation2] sm:$0xff]
  %v271 = vld [vmem:[#allocation2 + $0x8] sm:$0xff]
  %vm275 = vcmask 1040384
  %v276 = vrot.slane %v253, 7
  %v277 = vrot.slane %v255, 7
  %v278 = vsel %vm275, %v276, %v277
  %v279 = vrot.slane %v258, 7
  %v280 = vsel %vm275, %v277, %v279
  %v283 = vadd.f32 %v270, %v278
  %v284 = vadd.f32 %v271, %v280
  %285 = vst [vmem:[#allocation2] sm:$0xff] %v283
  %286 = vst [vmem:[#allocation2 + $0x8] sm:$0xff] %v284
  %v287 = vld [vmem:[#allocation2 + $0x10] sm:$0xff]
  %v288 = vld [vmem:[#allocation2 + $0x18] sm:$0xff]
  %v292 = vrot.slane %v260, 7
  %v293 = vrot.slane %v263, 7
  %v294 = vsel %vm275, %v292, %v293
  %v295 = vrot.slane %v265, 7
  %v296 = vsel %vm275, %v293, %v295
  %v299 = vadd.f32 %v287, %v294
  %v300 = vadd.f32 %v288, %v296
  %301 = vst [vmem:[#allocation2 + $0x10] sm:$0xff] %v299
  %302 = vst [vmem:[#allocation2 + $0x18] sm:$0xff] %v300
  %s303 = scalar_lea.vmem %s1, 128
  %v304 = vld [vmem:[%s303] sm:$0xf]
  %v305 = vld [vmem:[%s303 + $0x4] sm:$0xf]
  %v306 = vld [vmem:[%s303 + $0x8] sm:$0xf]
  %v307 = vld [vmem:[%s303 + $0xc] sm:$0xf]
  %v308 = vld [vmem:[%s303 + $0x10] sm:$0xf]
  %v309 = vld [vmem:[%s303 + $0x14] sm:$0xf]
  %v310 = vld [vmem:[%s303 + $0x18] sm:$0xf]
  %v311 = vld [vmem:[%s303 + $0x1c] sm:$0xf]
  %v312 = vld [vmem:[%s303 + $0x20] sm:$0xf]
  %v313 = vld [vmem:[%s303 + $0x24] sm:$0xf]
  %v314 = vld [vmem:[%s303 + $0x28] sm:$0xf]
  %v315 = vld [vmem:[%s303 + $0x2c] sm:$0xf]
  %v316 = vld [vmem:[%s303 + $0x30] sm:$0xf]
  %v317 = vld [vmem:[%s303 + $0x34] sm:$0xf]
  %v318 = vld [vmem:[%s303 + $0x38] sm:$0xf]
  %v319 = vld [vmem:[%s303 + $0x3c] sm:$0xf]
  %v320 = vld [vmem:[%s303 + $0x40] sm:$0xf]
  %v321 = vld [vmem:[%s303 + $0x44] sm:$0xf]
  %v322 = vld [vmem:[%s303 + $0x48] sm:$0xf]
  %v323 = vld [vmem:[%s303 + $0x4c] sm:$0xf]
  %v324 = vld [vmem:[%s303 + $0x50] sm:$0xf]
  %v325 = vld [vmem:[%s303 + $0x54] sm:$0xf]
  %v326 = vld [vmem:[%s303 + $0x58] sm:$0xf]
  %v327 = vld [vmem:[%s303 + $0x5c] sm:$0xf]
  %v328 = vld [vmem:[%s303 + $0x60] sm:$0xf]
  %v329 = vld [vmem:[%s303 + $0x64] sm:$0xf]
  %v330 = vld [vmem:[%s303 + $0x68] sm:$0xf]
  %v331 = vld [vmem:[%s303 + $0x6c] sm:$0xf]
  %v332 = vld [vmem:[%s303 + $0x70] sm:$0xf]
  %v333 = vld [vmem:[%s303 + $0x74] sm:$0xf]
  %v334 = vld [vmem:[%s303 + $0x78] sm:$0xf]
  %v335 = vld [vmem:[%s303 + $0x7c] sm:$0xf]
  %v368 = vunpack.c.l.b16 %v304
  %v369 = vunpack.c.l.b16 %v305
  %v370 = vunpack.c.l.b16 %v306
  %v371 = vunpack.c.l.b16 %v307
  %v372 = vunpack.c.l.b16 %v308
  %v373 = vunpack.c.l.b16 %v309
  %v374 = vunpack.c.l.b16 %v310
  %v375 = vunpack.c.l.b16 %v311
  %v376 = vunpack.c.l.b16 %v312
  %v377 = vunpack.c.l.b16 %v313
  %v378 = vunpack.c.l.b16 %v314
  %v379 = vunpack.c.l.b16 %v315
  %v380 = vunpack.c.l.b16 %v316
  %v381 = vunpack.c.l.b16 %v317
  %v382 = vunpack.c.l.b16 %v318
  %v383 = vunpack.c.l.b16 %v319
  %v384 = vunpack.c.l.b16 %v320
  %v385 = vunpack.c.l.b16 %v321
  %v386 = vunpack.c.l.b16 %v322
  %v387 = vunpack.c.l.b16 %v323
  %v388 = vunpack.c.l.b16 %v324
  %v389 = vunpack.c.l.b16 %v325
  %v390 = vunpack.c.l.b16 %v326
  %v391 = vunpack.c.l.b16 %v327
  %v392 = vunpack.c.l.b16 %v328
  %v393 = vunpack.c.l.b16 %v329
  %v394 = vunpack.c.l.b16 %v330
  %v395 = vunpack.c.l.b16 %v331
  %v396 = vunpack.c.l.b16 %v332
  %v397 = vunpack.c.l.b16 %v333
  %v398 = vunpack.c.l.b16 %v334
  %v399 = vunpack.c.l.b16 %v335
  %v400 = vpack.c.b16 %v369, %v368
  %v401 = vpack.c.b16 %v371, %v370
  %v402 = vpack.c.b16 %v373, %v372
  %v403 = vpack.c.b16 %v375, %v374
  %v404 = vpack.c.b16 %v377, %v376
  %v405 = vpack.c.b16 %v379, %v378
  %v406 = vpack.c.b16 %v381, %v380
  %v407 = vpack.c.b16 %v383, %v382
  %v408 = vpack.c.b16 %v385, %v384
  %v409 = vpack.c.b16 %v387, %v386
  %v410 = vpack.c.b16 %v389, %v388
  %v411 = vpack.c.b16 %v391, %v390
  %v412 = vpack.c.b16 %v393, %v392
  %v413 = vpack.c.b16 %v395, %v394
  %v414 = vpack.c.b16 %v397, %v396
  %v415 = vpack.c.b16 %v399, %v398
  %432 = vmatpush.bf16.msra.mxu0 %v407
  %433 = vmatpush.bf16.msra.mxu0 %v406
  %434 = vmatpush.bf16.msra.mxu0 %v405
  %435 = vmatpush.bf16.msra.mxu0 %v404
  %436 = vmatpush.bf16.msra.mxu0 %v403
  %437 = vmatpush.bf16.msra.mxu0 %v402
  %438 = vmatpush.bf16.msra.mxu0 %v401
  %439 = vmatpush.bf16.msra.mxu0 %v400
  %440 = vmatmul.bf16.gmra.mxu0 %v104
  %v441 = vpop.f32.mrf.mxu0
  %v442 = vpop.f32.mrf.mxu0
  %v443 = vadd.f32 0.0, %v442
  %444 = vmatmul.bf16.gmra.mxu0 %v106
  %v445 = vpop.f32.mrf.mxu0
  %v446 = vadd.f32 0.0, %v445
  %v447 = vpop.f32.mrf.mxu0
  %448 = vmatmul.bf16.gmra.mxu0 %v108
  %v449 = vpop.f32.mrf.mxu0
  %v450 = vadd.f32 0.0, %v449
  %v451 = vpop.f32.mrf.mxu0
  %v452 = vadd.f32 0.0, %v451
  %453 = vmatmul.bf16.gmra.mxu0 %v110
  %v454 = vpop.f32.mrf.mxu0
  %v455 = vpop.f32.mrf.mxu0
  %456 = vdwg.mxu0
  %457 = vmatpush.bf16.msra.mxu0 %v415
  %458 = vmatpush.bf16.msra.mxu0 %v414
  %459 = vmatpush.bf16.msra.mxu0 %v413
  %460 = vmatpush.bf16.msra.mxu0 %v412
  %461 = vmatpush.bf16.msra.mxu0 %v411
  %462 = vmatpush.bf16.msra.mxu0 %v410
  %463 = vmatpush.bf16.msra.mxu0 %v409
  %464 = vmatpush.bf16.msra.mxu0 %v408
  %465 = vmatmul.bf16.gmra.mxu0 %v105
  %v466 = vpop.f32.mrf.mxu0
  %v467 = vpop.f32.mrf.mxu0
  %v468 = vadd.f32 %v443, %v467
  %469 = vmatmul.bf16.gmra.mxu0 %v107
  %v470 = vpop.f32.mrf.mxu0
  %v471 = vadd.f32 %v446, %v470
  %v472 = vpop.f32.mrf.mxu0
  %473 = vmatmul.bf16.gmra.mxu0 %v109
  %v474 = vpop.f32.mrf.mxu0
  %v475 = vadd.f32 %v450, %v474
  %v476 = vpop.f32.mrf.mxu0
  %v477 = vadd.f32 %v452, %v476
  %478 = vmatmul.bf16.gmra.mxu0 %v111
  %v479 = vpop.f32.mrf.mxu0
  %v480 = vpop.f32.mrf.mxu0
  %481 = vdwg.mxu0
  %v482 = vld [vmem:[#allocation2] sm:$0xff]
  %v483 = vld [vmem:[#allocation2 + $0x8] sm:$0xff]
  %v484 = vadd.f32 %v482, %v468
  %v485 = vadd.f32 %v483, %v471
  %486 = vst [vmem:[#allocation2] sm:$0xff] %v484
  %487 = vst [vmem:[#allocation2 + $0x8] sm:$0xff] %v485
  %v488 = vld [vmem:[#allocation2 + $0x10] sm:$0xff]
  %v489 = vld [vmem:[#allocation2 + $0x18] sm:$0xff]
  %v490 = vadd.f32 %v488, %v475
  %v491 = vadd.f32 %v489, %v477
  %492 = vst [vmem:[#allocation2 + $0x10] sm:$0xff] %v490
  %493 = vst [vmem:[#allocation2 + $0x18] sm:$0xff] %v491
  %s494 = scalar_lea.vmem %s1, 256
  %v495 = vld [vmem:[%s494] sm:$0xf]
  %v496 = vld [vmem:[%s494 + $0x4] sm:$0xf]
  %v497 = vld [vmem:[%s494 + $0x8] sm:$0xf]
  %v498 = vld [vmem:[%s494 + $0xc] sm:$0xf]
  %v499 = vld [vmem:[%s494 + $0x10] sm:$0xf]
  %v500 = vld [vmem:[%s494 + $0x14] sm:$0xf]
  %v501 = vld [vmem:[%s494 + $0x18] sm:$0xf]
  %v502 = vld [vmem:[%s494 + $0x1c] sm:$0xf]
  %v503 = vld [vmem:[%s494 + $0x20] sm:$0xf]
  %v504 = vld [vmem:[%s494 + $0x24] sm:$0xf]
  %v505 = vld [vmem:[%s494 + $0x28] sm:$0xf]
  %v506 = vld [vmem:[%s494 + $0x2c] sm:$0xf]
  %v507 = vld [vmem:[%s494 + $0x30] sm:$0xf]
  %v508 = vld [vmem:[%s494 + $0x34] sm:$0xf]
  %v509 = vld [vmem:[%s494 + $0x38] sm:$0xf]
  %v510 = vld [vmem:[%s494 + $0x3c] sm:$0xf]
  %v511 = vld [vmem:[%s494 + $0x40] sm:$0xf]
  %v512 = vld [vmem:[%s494 + $0x44] sm:$0xf]
  %v513 = vld [vmem:[%s494 + $0x48] sm:$0xf]
  %v514 = vld [vmem:[%s494 + $0x4c] sm:$0xf]
  %v515 = vld [vmem:[%s494 + $0x50] sm:$0xf]
  %v516 = vld [vmem:[%s494 + $0x54] sm:$0xf]
  %v517 = vld [vmem:[%s494 + $0x58] sm:$0xf]
  %v518 = vld [vmem:[%s494 + $0x5c] sm:$0xf]
  %v519 = vld [vmem:[%s494 + $0x60] sm:$0xf]
  %v520 = vld [vmem:[%s494 + $0x64] sm:$0xf]
  %v521 = vld [vmem:[%s494 + $0x68] sm:$0xf]
  %v522 = vld [vmem:[%s494 + $0x6c] sm:$0xf]
  %v523 = vld [vmem:[%s494 + $0x70] sm:$0xf]
  %v524 = vld [vmem:[%s494 + $0x74] sm:$0xf]
  %v525 = vld [vmem:[%s494 + $0x78] sm:$0xf]
  %v526 = vld [vmem:[%s494 + $0x7c] sm:$0xf]
  %v559 = vunpack.c.l.b16 %v495
  %v560 = vunpack.c.l.b16 %v496
  %v561 = vunpack.c.l.b16 %v497
  %v562 = vunpack.c.l.b16 %v498
  %v563 = vunpack.c.l.b16 %v499
  %v564 = vunpack.c.l.b16 %v500
  %v565 = vunpack.c.l.b16 %v501
  %v566 = vunpack.c.l.b16 %v502
  %v567 = vunpack.c.l.b16 %v503
  %v568 = vunpack.c.l.b16 %v504
  %v569 = vunpack.c.l.b16 %v505
  %v570 = vunpack.c.l.b16 %v506
  %v571 = vunpack.c.l.b16 %v507
  %v572 = vunpack.c.l.b16 %v508
  %v573 = vunpack.c.l.b16 %v509
  %v574 = vunpack.c.l.b16 %v510
  %v575 = vunpack.c.l.b16 %v511
  %v576 = vunpack.c.l.b16 %v512
  %v577 = vunpack.c.l.b16 %v513
  %v578 = vunpack.c.l.b16 %v514
  %v579 = vunpack.c.l.b16 %v515
  %v580 = vunpack.c.l.b16 %v516
  %v581 = vunpack.c.l.b16 %v517
  %v582 = vunpack.c.l.b16 %v518
  %v583 = vunpack.c.l.b16 %v519
  %v584 = vunpack.c.l.b16 %v520
  %v585 = vunpack.c.l.b16 %v521
  %v586 = vunpack.c.l.b16 %v522
  %v587 = vunpack.c.l.b16 %v523
  %v588 = vunpack.c.l.b16 %v524
  %v589 = vunpack.c.l.b16 %v525
  %v590 = vunpack.c.l.b16 %v526
  %v591 = vpack.c.b16 %v560, %v559
  %v592 = vpack.c.b16 %v562, %v561
  %v593 = vpack.c.b16 %v564, %v563
  %v594 = vpack.c.b16 %v566, %v565
  %v595 = vpack.c.b16 %v568, %v567
  %v596 = vpack.c.b16 %v570, %v569
  %v597 = vpack.c.b16 %v572, %v571
  %v598 = vpack.c.b16 %v574, %v573
  %v599 = vpack.c.b16 %v576, %v575
  %v600 = vpack.c.b16 %v578, %v577
  %v601 = vpack.c.b16 %v580, %v579
  %v602 = vpack.c.b16 %v582, %v581
  %v603 = vpack.c.b16 %v584, %v583
  %v604 = vpack.c.b16 %v586, %v585
  %v605 = vpack.c.b16 %v588, %v587
  %v606 = vpack.c.b16 %v590, %v589
  %623 = vmatpush.bf16.msra.mxu0 %v598
  %624 = vmatpush.bf16.msra.mxu0 %v597
  %625 = vmatpush.bf16.msra.mxu0 %v596
  %626 = vmatpush.bf16.msra.mxu0 %v595
  %627 = vmatpush.bf16.msra.mxu0 %v594
  %628 = vmatpush.bf16.msra.mxu0 %v593
  %629 = vmatpush.bf16.msra.mxu0 %v592
  %630 = vmatpush.bf16.msra.mxu0 %v591
  %631 = vmatmul.bf16.gmra.mxu0 %v104
  %v632 = vpop.f32.mrf.mxu0
  %v633 = vpop.f32.mrf.mxu0
  %v634 = vadd.f32 0.0, %v633
  %635 = vmatmul.bf16.gmra.mxu0 %v106
  %v636 = vpop.f32.mrf.mxu0
  %v637 = vadd.f32 0.0, %v636
  %v638 = vpop.f32.mrf.mxu0
  %v639 = vadd.f32 0.0, %v638
  %640 = vmatmul.bf16.gmra.mxu0 %v108
  %v641 = vpop.f32.mrf.mxu0
  %v642 = vadd.f32 0.0, %v641
  %v643 = vpop.f32.mrf.mxu0
  %v644 = vadd.f32 0.0, %v643
  %645 = vmatmul.bf16.gmra.mxu0 %v110
  %v646 = vpop.f32.mrf.mxu0
  %v647 = vadd.f32 0.0, %v646
  %v648 = vpop.f32.mrf.mxu0
  %649 = vdwg.mxu0
  %650 = vmatpush.bf16.msra.mxu0 %v606
  %651 = vmatpush.bf16.msra.mxu0 %v605
  %652 = vmatpush.bf16.msra.mxu0 %v604
  %653 = vmatpush.bf16.msra.mxu0 %v603
  %654 = vmatpush.bf16.msra.mxu0 %v602
  %655 = vmatpush.bf16.msra.mxu0 %v601
  %656 = vmatpush.bf16.msra.mxu0 %v600
  %657 = vmatpush.bf16.msra.mxu0 %v599
  %658 = vmatmul.bf16.gmra.mxu0 %v105
  %v659 = vpop.f32.mrf.mxu0
  %v660 = vpop.f32.mrf.mxu0
  %v661 = vadd.f32 %v634, %v660
  %662 = vmatmul.bf16.gmra.mxu0 %v107
  %v663 = vpop.f32.mrf.mxu0
  %v664 = vadd.f32 %v637, %v663
  %v665 = vpop.f32.mrf.mxu0
  %v666 = vadd.f32 %v639, %v665
  %667 = vmatmul.bf16.gmra.mxu0 %v109
  %v668 = vpop.f32.mrf.mxu0
  %v669 = vadd.f32 %v642, %v668
  %v670 = vpop.f32.mrf.mxu0
  %v671 = vadd.f32 %v644, %v670
  %672 = vmatmul.bf16.gmra.mxu0 %v111
  %v673 = vpop.f32.mrf.mxu0
  %v674 = vadd.f32 %v647, %v673
  %v675 = vpop.f32.mrf.mxu0
  %676 = vdwg.mxu0
  %v677 = vld [vmem:[#allocation2] sm:$0xff]
  %v678 = vld [vmem:[#allocation2 + $0x8] sm:$0xff]
  %vm682 = vcmask 1046528
  %v683 = vrot.slane %v661, 1
  %v684 = vrot.slane %v664, 1
  %v685 = vsel %vm682, %v683, %v684
  %v686 = vrot.slane %v666, 1
  %v687 = vsel %vm682, %v684, %v686
  %v690 = vadd.f32 %v677, %v685
  %v691 = vadd.f32 %v678, %v687
  %692 = vst [vmem:[#allocation2] sm:$0xff] %v690
  %693 = vst [vmem:[#allocation2 + $0x8] sm:$0xff] %v691
  %v694 = vld [vmem:[#allocation2 + $0x10] sm:$0xff]
  %v695 = vld [vmem:[#allocation2 + $0x18] sm:$0xff]
  %v699 = vrot.slane %v669, 1
  %v700 = vrot.slane %v671, 1
  %v701 = vsel %vm682, %v699, %v700
  %v702 = vrot.slane %v674, 1
  %v703 = vsel %vm682, %v700, %v702
  %v706 = vadd.f32 %v694, %v701
  %v707 = vadd.f32 %v695, %v703
  %708 = vst [vmem:[#allocation2 + $0x10] sm:$0xff] %v706
  %709 = vst [vmem:[#allocation2 + $0x18] sm:$0xff] %v707
  %v710 = vld [vmem:[#allocation2] sm:$0xff]
  %v711 = vld [vmem:[#allocation2 + $0x8] sm:$0xff]
  %v712 = vld [vmem:[#allocation2 + $0x10] sm:$0xff]
  %v713 = vld [vmem:[#allocation2 + $0x18] sm:$0xff]
  %v714 = vld [vmem:[%s9] sm:$0xff]
  %v715 = vld [vmem:[%s9 + $0x8] sm:$0xff]
  %v716 = vld [vmem:[%s9 + $0x10] sm:$0xff]
  %v717 = vld [vmem:[%s9 + $0x18] sm:$0xff]
  %v718 = vld [vmem:[%s9 + $0x20] sm:$0xff]
  %v719 = vld [vmem:[%s9 + $0x28] sm:$0xff]
  %v720 = vld [vmem:[%s9 + $0x30] sm:$0xff]
  %v721 = vld [vmem:[%s9 + $0x38] sm:$0xff]
  %v722 = vld [vmem:[%s9 + $0x40] sm:$0xff]
  %v723 = vld [vmem:[%s9 + $0x48] sm:$0xff]
  %v724 = vld [vmem:[%s9 + $0x50] sm:$0xff]
  %v725 = vld [vmem:[%s9 + $0x58] sm:$0xff]
  %v726 = vld [vmem:[%s9 + $0x60] sm:$0xff]
  %v727 = vld [vmem:[%s9 + $0x68] sm:$0xff]
  %v728 = vld [vmem:[%s9 + $0x70] sm:$0xff]
  %v729 = vld [vmem:[%s9 + $0x78] sm:$0xff]
  %730 = vmatpush.msra.mxu0 %v729
  %731 = vmatpush.msra.mxu0 %v728
  %732 = vmatpush.msra.mxu0 %v727
  %733 = vmatpush.msra.mxu0 %v726
  %734 = vmatpush.msra.mxu0 %v725
  %735 = vmatpush.msra.mxu0 %v724
  %736 = vmatpush.msra.mxu0 %v723
  %737 = vmatpush.msra.mxu0 %v722
  %738 = vmatpush.msra.mxu0 %v721
  %739 = vmatpush.msra.mxu0 %v720
  %740 = vmatpush.msra.mxu0 %v719
  %741 = vmatpush.msra.mxu0 %v718
  %742 = vmatpush.msra.mxu0 %v717
  %743 = vmatpush.msra.mxu0 %v716
  %744 = vmatpush.msra.mxu0 %v715
  %745 = vmatpush.msra.mxu0 %v714
  %746 = vmatmul.f32.gmra.mxu0 %v710
  %v747 = vpop.f32.mrf.mxu0
  %v748 = vadd.f32 0.0, %v747
  %749 = vmatmul.f32.gmra.mxu0 %v711
  %v750 = vpop.f32.mrf.mxu0
  %v751 = vadd.f32 0.0, %v750
  %752 = vmatmul.f32.gmra.mxu0 %v712
  %v753 = vpop.f32.mrf.mxu0
  %v754 = vadd.f32 0.0, %v753
  %755 = vmatmul.f32.gmra.mxu0 %v713
  %v756 = vpop.f32.mrf.mxu0
  %v757 = vadd.f32 0.0, %v756
  %758 = vdwg.mxu0
  %v759 = vadd.f32 %v748, %v751
  %v760 = vadd.f32 %v759, %v754
  %v761 = vadd.f32 %v760, %v757
  %v762 = vrot.slane %v761, 4
  %v763 = vadd.f32 %v761, %v762
  %v764 = vrot.slane %v763, 2
  %v765 = vadd.f32 %v763, %v764
  %v766 = vrot.slane %v765, 1
  %v767 = vadd.f32 %v765, %v766
  %v768 = vrcp.pop 512.0
  %v769 = vmul.f32 512.0, %v768
  %v770 = vsub.f32 1.0, %v769
  %v771 = vmul.f32 %v768, %v770
  %v772 = vadd.f32 %v768, %v771
  %vm773 = vweird.f32 %v768
  %v774 = vsel %vm773, %v768, %v772
  %v775 = vmul.f32 %v767, %v774
  %v776 = vsub.f32 %v710, %v775
  %v777 = vsub.f32 %v711, %v775
  %v778 = vsub.f32 %v712, %v775
  %v779 = vsub.f32 %v713, %v775
  %v780 = vmul.f32 %v776, %v776
  %v781 = vmul.f32 %v777, %v777
  %v782 = vmul.f32 %v778, %v778
  %v783 = vmul.f32 %v779, %v779
  %784 = vmatpush.msra.mxu0 %v729
  %785 = vmatpush.msra.mxu0 %v728
  %786 = vmatpush.msra.mxu0 %v727
  %787 = vmatpush.msra.mxu0 %v726
  %788 = vmatpush.msra.mxu0 %v725
  %789 = vmatpush.msra.mxu0 %v724
  %790 = vmatpush.msra.mxu0 %v723
  %791 = vmatpush.msra.mxu0 %v722
  %792 = vmatpush.msra.mxu0 %v721
  %793 = vmatpush.msra.mxu0 %v720
  %794 = vmatpush.msra.mxu0 %v719
  %795 = vmatpush.msra.mxu0 %v718
  %796 = vmatpush.msra.mxu0 %v717
  %797 = vmatpush.msra.mxu0 %v716
  %798 = vmatpush.msra.mxu0 %v715
  %799 = vmatpush.msra.mxu0 %v714
  %800 = vmatmul.f32.gmra.mxu0 %v780
  %v801 = vpop.f32.mrf.mxu0
  %v802 = vadd.f32 0.0, %v801
  %803 = vmatmul.f32.gmra.mxu0 %v781
  %v804 = vpop.f32.mrf.mxu0
  %v805 = vadd.f32 0.0, %v804
  %806 = vmatmul.f32.gmra.mxu0 %v782
  %v807 = vpop.f32.mrf.mxu0
  %v808 = vadd.f32 0.0, %v807
  %809 = vmatmul.f32.gmra.mxu0 %v783
  %v810 = vpop.f32.mrf.mxu0
  %v811 = vadd.f32 0.0, %v810
  %812 = vdwg.mxu0
  %v813 = vadd.f32 %v802, %v805
  %v814 = vadd.f32 %v813, %v808
  %v815 = vadd.f32 %v814, %v811
  %v816 = vrot.slane %v815, 4
  %v817 = vadd.f32 %v815, %v816
  %v818 = vrot.slane %v817, 2
  %v819 = vadd.f32 %v817, %v818
  %v820 = vrot.slane %v819, 1
  %v821 = vadd.f32 %v819, %v820
  %v822 = vmul.f32 %v821, %v774
  %v823 = vld [vmem:[%s3] sm:$0x1]
  %v824 = vadd.f32 %v822, 1e-05
  %v825 = vrsqrt.pop %v824
  %v826 = vmul.f32 %v825, %v824
  %v827 = vmul.f32 %v826, %v825
  %v828 = vmul.f32 0.5, %v827
  %v829 = vsub.f32 1.5, %v828
  %v830 = vmul.f32 %v825, %v829
  %vm831 = vweird.f32 %v824
  %vm832 = vweird.f32 %v825
  %vm833 = vmor %vm831, %vm832
  %v834 = vsel %vm833, %v825, %v830
  %v835 = vmul.f32 %v823, %v834
  %v836 = vld [vmem:[%s4] sm:$0x1]
  %v837 = vmul.f32 %v775, %v835
  %v838 = vsub.f32 %v836, %v837
  %v840 = vperm.slane %v835, 0
  %v842 = vmul.f32 %v710, %v840
  %v843 = vmul.f32 %v711, %v840
  %v844 = vmul.f32 %v712, %v840
  %v845 = vmul.f32 %v713, %v840
  %v847 = vperm.slane %v838, 0
  %v849 = vadd.f32 %v842, %v847
  %v850 = vadd.f32 %v843, %v847
  %v851 = vadd.f32 %v844, %v847
  %v852 = vadd.f32 %v845, %v847
  %v853 = vmax.f32 %v849, 0.0
  %v854 = vmax.f32 %v850, 0.0
  %v855 = vmax.f32 %v851, 0.0
  %v856 = vmax.f32 %v852, 0.0
  %857 = vst [vmem:[#allocation3] sm:$0xf] 0
  %858 = vst [vmem:[#allocation3 + $0x4] sm:$0xf] 0
  %859 = vst [vmem:[#allocation3 + $0x8] sm:$0xf] 0
  %860 = vst [vmem:[#allocation3 + $0xc] sm:$0xf] 0
  %861 = vst [vmem:[#allocation3 + $0x10] sm:$0xf] 0
  %862 = vst [vmem:[#allocation3 + $0x14] sm:$0xf] 0
  %863 = vst [vmem:[#allocation3 + $0x18] sm:$0xf] 0
  %v864 = vpack.c.bf16 %v853, %v853
  %v865 = vpack.c.bf16 %v854, %v854
  %866 = vst [vmem:[#allocation3 + $0x4] sm:$0xf] %v864
  %867 = vst [vmem:[#allocation3 + $0x8] sm:$0xf] %v865
  %v868 = vpack.c.bf16 %v855, %v855
  %v869 = vpack.c.bf16 %v856, %v856
  %870 = vst [vmem:[#allocation3 + $0x10] sm:$0xf] %v868
  %871 = vst [vmem:[#allocation3 + $0x14] sm:$0xf] %v869
  %v872 = vld [vmem:[#allocation3] sm:$0xf]
  %v873 = vld [vmem:[#allocation3 + $0x4] sm:$0xf]
  %v874 = vld [vmem:[#allocation3 + $0x8] sm:$0xf]
  %v875 = vld [vmem:[#allocation3 + $0xc] sm:$0xf]
  %v876 = vld [vmem:[#allocation3 + $0x10] sm:$0xf]
  %v877 = vld [vmem:[#allocation3 + $0x14] sm:$0xf]
  %v878 = vld [vmem:[#allocation3 + $0x18] sm:$0xf]
  %v879 = vld [vmem:[%s6] sm:$0x1]
  %v881 = vperm.slane %v879, 0
  %883 = vst [vmem:[%s10] sm:$0xff] %v881
  %884 = vst [vmem:[%s10 + $0x8] sm:$0xff] %v881
  %885 = vst [vmem:[%s10 + $0x10] sm:$0xff] %v881
  %886 = vst [vmem:[%s10 + $0x18] sm:$0xff] %v881
  %v887 = vld [vmem:[%s5] sm:$0xf]
  %v888 = vld [vmem:[%s5 + $0x4] sm:$0xf]
  %v889 = vld [vmem:[%s5 + $0x8] sm:$0xf]
  %v890 = vld [vmem:[%s5 + $0xc] sm:$0xf]
  %v891 = vld [vmem:[%s5 + $0x10] sm:$0xf]
  %v892 = vld [vmem:[%s5 + $0x14] sm:$0xf]
  %v893 = vld [vmem:[%s5 + $0x18] sm:$0xf]
  %v894 = vld [vmem:[%s5 + $0x1c] sm:$0xf]
  %v895 = vld [vmem:[%s5 + $0x20] sm:$0xf]
  %v896 = vld [vmem:[%s5 + $0x24] sm:$0xf]
  %v897 = vld [vmem:[%s5 + $0x28] sm:$0xf]
  %v898 = vld [vmem:[%s5 + $0x2c] sm:$0xf]
  %v899 = vld [vmem:[%s5 + $0x30] sm:$0xf]
  %v900 = vld [vmem:[%s5 + $0x34] sm:$0xf]
  %v901 = vld [vmem:[%s5 + $0x38] sm:$0xf]
  %v902 = vld [vmem:[%s5 + $0x3c] sm:$0xf]
  %v910 = vunpack.c.l.b16 %v872
  %v911 = vunpack.c.l.b16 %v873
  %v912 = vunpack.c.l.b16 %v874
  %v913 = vunpack.c.l.b16 %v875
  %v914 = vunpack.c.l.b16 %v876
  %v915 = vunpack.c.l.b16 %v877
  %v916 = vunpack.c.l.b16 %v878
  %v917 = vpack.c.b16 %v911, %v910
  %v918 = vpack.c.b16 %v913, %v912
  %v919 = vpack.c.b16 %v915, %v914
  %v920 = vpack.c.b16 %v916, %v916
  %v941 = vunpack.c.l.b16 %v887
  %v942 = vunpack.c.l.b16 %v888
  %v943 = vunpack.c.l.b16 %v889
  %v944 = vunpack.c.l.b16 %v890
  %v945 = vunpack.c.l.b16 %v891
  %v946 = vunpack.c.l.b16 %v892
  %v947 = vunpack.c.l.b16 %v893
  %v948 = vunpack.c.l.b16 %v894
  %v949 = vunpack.c.l.b16 %v895
  %v950 = vunpack.c.l.b16 %v896
  %v951 = vunpack.c.l.b16 %v897
  %v952 = vunpack.c.l.b16 %v898
  %v953 = vunpack.c.l.b16 %v899
  %v954 = vunpack.c.l.b16 %v900
  %v955 = vunpack.c.l.b16 %v901
  %v956 = vunpack.c.l.b16 %v902
  %v957 = vpack.c.b16 %v942, %v941
  %v958 = vpack.c.b16 %v944, %v943
  %v959 = vpack.c.b16 %v946, %v945
  %v960 = vpack.c.b16 %v948, %v947
  %v961 = vpack.c.b16 %v950, %v949
  %v962 = vpack.c.b16 %v952, %v951
  %v963 = vpack.c.b16 %v954, %v953
  %v964 = vpack.c.b16 %v956, %v955
  %973 = vmatpush.bf16.msra.mxu0 %v964
  %974 = vmatpush.bf16.msra.mxu0 %v963
  %975 = vmatpush.bf16.msra.mxu0 %v962
  %976 = vmatpush.bf16.msra.mxu0 %v961
  %977 = vmatpush.bf16.msra.mxu0 %v960
  %978 = vmatpush.bf16.msra.mxu0 %v959
  %979 = vmatpush.bf16.msra.mxu0 %v958
  %980 = vmatpush.bf16.msra.mxu0 %v957
  %981 = vmatmul.bf16.gmra.mxu0 %v917
  %v982 = vpop.f32.mrf.mxu0
  %v983 = vadd.f32 0.0, %v982
  %v984 = vpop.f32.mrf.mxu0
  %v985 = vadd.f32 0.0, %v984
  %986 = vmatmul.bf16.gmra.mxu0 %v918
  %v987 = vpop.f32.mrf.mxu0
  %v988 = vadd.f32 0.0, %v987
  %v989 = vpop.f32.mrf.mxu0
  %v990 = vadd.f32 0.0, %v989
  %991 = vmatmul.bf16.gmra.mxu0 %v919
  %v992 = vpop.f32.mrf.mxu0
  %v993 = vadd.f32 0.0, %v992
  %v994 = vpop.f32.mrf.mxu0
  %v995 = vadd.f32 0.0, %v994
  %996 = vmatmul.bf16.gmra.mxu0 %v920
  %v997 = vpop.f32.mrf.mxu0
  %v998 = vpop.f32.mrf.mxu0
  %999 = vdwg.mxu0
  %v1000 = vld [vmem:[%s10] sm:$0xff]
  %v1001 = vld [vmem:[%s10 + $0x8] sm:$0xff]
  %v1005 = vrot.slane %v983, 7
  %v1006 = vrot.slane %v985, 7
  %v1007 = vsel %vm275, %v1005, %v1006
  %v1008 = vrot.slane %v988, 7
  %v1009 = vsel %vm275, %v1006, %v1008
  %v1012 = vadd.f32 %v1000, %v1007
  %v1013 = vadd.f32 %v1001, %v1009
  %1014 = vst [vmem:[%s10] sm:$0xff] %v1012
  %1015 = vst [vmem:[%s10 + $0x8] sm:$0xff] %v1013
  %v1016 = vld [vmem:[%s10 + $0x10] sm:$0xff]
  %v1017 = vld [vmem:[%s10 + $0x18] sm:$0xff]
  %v1021 = vrot.slane %v990, 7
  %v1022 = vrot.slane %v993, 7
  %v1023 = vsel %vm275, %v1021, %v1022
  %v1024 = vrot.slane %v995, 7
  %v1025 = vsel %vm275, %v1022, %v1024
  %v1028 = vadd.f32 %v1016, %v1023
  %v1029 = vadd.f32 %v1017, %v1025
  %1030 = vst [vmem:[%s10 + $0x10] sm:$0xff] %v1028
  %1031 = vst [vmem:[%s10 + $0x18] sm:$0xff] %v1029
  %s1032 = scalar_lea.vmem %s5, 64
  %v1033 = vld [vmem:[%s1032] sm:$0xf]
  %v1034 = vld [vmem:[%s1032 + $0x4] sm:$0xf]
  %v1035 = vld [vmem:[%s1032 + $0x8] sm:$0xf]
  %v1036 = vld [vmem:[%s1032 + $0xc] sm:$0xf]
  %v1037 = vld [vmem:[%s1032 + $0x10] sm:$0xf]
  %v1038 = vld [vmem:[%s1032 + $0x14] sm:$0xf]
  %v1039 = vld [vmem:[%s1032 + $0x18] sm:$0xf]
  %v1040 = vld [vmem:[%s1032 + $0x1c] sm:$0xf]
  %v1041 = vld [vmem:[%s1032 + $0x20] sm:$0xf]
  %v1042 = vld [vmem:[%s1032 + $0x24] sm:$0xf]
  %v1043 = vld [vmem:[%s1032 + $0x28] sm:$0xf]
  %v1044 = vld [vmem:[%s1032 + $0x2c] sm:$0xf]
  %v1045 = vld [vmem:[%s1032 + $0x30] sm:$0xf]
  %v1046 = vld [vmem:[%s1032 + $0x34] sm:$0xf]
  %v1047 = vld [vmem:[%s1032 + $0x38] sm:$0xf]
  %v1048 = vld [vmem:[%s1032 + $0x3c] sm:$0xf]
  %v1065 = vunpack.c.l.b16 %v1033
  %v1066 = vunpack.c.l.b16 %v1034
  %v1067 = vunpack.c.l.b16 %v1035
  %v1068 = vunpack.c.l.b16 %v1036
  %v1069 = vunpack.c.l.b16 %v1037
  %v1070 = vunpack.c.l.b16 %v1038
  %v1071 = vunpack.c.l.b16 %v1039
  %v1072 = vunpack.c.l.b16 %v1040
  %v1073 = vunpack.c.l.b16 %v1041
  %v1074 = vunpack.c.l.b16 %v1042
  %v1075 = vunpack.c.l.b16 %v1043
  %v1076 = vunpack.c.l.b16 %v1044
  %v1077 = vunpack.c.l.b16 %v1045
  %v1078 = vunpack.c.l.b16 %v1046
  %v1079 = vunpack.c.l.b16 %v1047
  %v1080 = vunpack.c.l.b16 %v1048
  %v1081 = vpack.c.b16 %v1066, %v1065
  %v1082 = vpack.c.b16 %v1068, %v1067
  %v1083 = vpack.c.b16 %v1070, %v1069
  %v1084 = vpack.c.b16 %v1072, %v1071
  %v1085 = vpack.c.b16 %v1074, %v1073
  %v1086 = vpack.c.b16 %v1076, %v1075
  %v1087 = vpack.c.b16 %v1078, %v1077
  %v1088 = vpack.c.b16 %v1080, %v1079
  %1097 = vmatpush.bf16.msra.mxu0 %v1088
  %1098 = vmatpush.bf16.msra.mxu0 %v1087
  %1099 = vmatpush.bf16.msra.mxu0 %v1086
  %1100 = vmatpush.bf16.msra.mxu0 %v1085
  %1101 = vmatpush.bf16.msra.mxu0 %v1084
  %1102 = vmatpush.bf16.msra.mxu0 %v1083
  %1103 = vmatpush.bf16.msra.mxu0 %v1082
  %1104 = vmatpush.bf16.msra.mxu0 %v1081
  %1105 = vmatmul.bf16.gmra.mxu0 %v917
  %v1106 = vpop.f32.mrf.mxu0
  %v1107 = vpop.f32.mrf.mxu0
  %v1108 = vadd.f32 0.0, %v1107
  %1109 = vmatmul.bf16.gmra.mxu0 %v918
  %v1110 = vpop.f32.mrf.mxu0
  %v1111 = vadd.f32 0.0, %v1110
  %v1112 = vpop.f32.mrf.mxu0
  %1113 = vmatmul.bf16.gmra.mxu0 %v919
  %v1114 = vpop.f32.mrf.mxu0
  %v1115 = vadd.f32 0.0, %v1114
  %v1116 = vpop.f32.mrf.mxu0
  %v1117 = vadd.f32 0.0, %v1116
  %1118 = vmatmul.bf16.gmra.mxu0 %v920
  %v1119 = vpop.f32.mrf.mxu0
  %v1120 = vpop.f32.mrf.mxu0
  %1121 = vdwg.mxu0
  %v1122 = vld [vmem:[%s10] sm:$0xff]
  %v1123 = vld [vmem:[%s10 + $0x8] sm:$0xff]
  %v1124 = vadd.f32 %v1122, %v1108
  %v1125 = vadd.f32 %v1123, %v1111
  %1126 = vst [vmem:[%s10] sm:$0xff] %v1124
  %1127 = vst [vmem:[%s10 + $0x8] sm:$0xff] %v1125
  %v1128 = vld [vmem:[%s10 + $0x10] sm:$0xff]
  %v1129 = vld [vmem:[%s10 + $0x18] sm:$0xff]
  %v1130 = vadd.f32 %v1128, %v1115
  %v1131 = vadd.f32 %v1129, %v1117
  %1132 = vst [vmem:[%s10 + $0x10] sm:$0xff] %v1130
  %1133 = vst [vmem:[%s10 + $0x18] sm:$0xff] %v1131
  %s1134 = scalar_lea.vmem %s5, 128
  %v1135 = vld [vmem:[%s1134] sm:$0xf]
  %v1136 = vld [vmem:[%s1134 + $0x4] sm:$0xf]
  %v1137 = vld [vmem:[%s1134 + $0x8] sm:$0xf]
  %v1138 = vld [vmem:[%s1134 + $0xc] sm:$0xf]
  %v1139 = vld [vmem:[%s1134 + $0x10] sm:$0xf]
  %v1140 = vld [vmem:[%s1134 + $0x14] sm:$0xf]
  %v1141 = vld [vmem:[%s1134 + $0x18] sm:$0xf]
  %v1142 = vld [vmem:[%s1134 + $0x1c] sm:$0xf]
  %v1143 = vld [vmem:[%s1134 + $0x20] sm:$0xf]
  %v1144 = vld [vmem:[%s1134 + $0x24] sm:$0xf]
  %v1145 = vld [vmem:[%s1134 + $0x28] sm:$0xf]
  %v1146 = vld [vmem:[%s1134 + $0x2c] sm:$0xf]
  %v1147 = vld [vmem:[%s1134 + $0x30] sm:$0xf]
  %v1148 = vld [vmem:[%s1134 + $0x34] sm:$0xf]
  %v1149 = vld [vmem:[%s1134 + $0x38] sm:$0xf]
  %v1150 = vld [vmem:[%s1134 + $0x3c] sm:$0xf]
  %v1167 = vunpack.c.l.b16 %v1135
  %v1168 = vunpack.c.l.b16 %v1136
  %v1169 = vunpack.c.l.b16 %v1137
  %v1170 = vunpack.c.l.b16 %v1138
  %v1171 = vunpack.c.l.b16 %v1139
  %v1172 = vunpack.c.l.b16 %v1140
  %v1173 = vunpack.c.l.b16 %v1141
  %v1174 = vunpack.c.l.b16 %v1142
  %v1175 = vunpack.c.l.b16 %v1143
  %v1176 = vunpack.c.l.b16 %v1144
  %v1177 = vunpack.c.l.b16 %v1145
  %v1178 = vunpack.c.l.b16 %v1146
  %v1179 = vunpack.c.l.b16 %v1147
  %v1180 = vunpack.c.l.b16 %v1148
  %v1181 = vunpack.c.l.b16 %v1149
  %v1182 = vunpack.c.l.b16 %v1150
  %v1183 = vpack.c.b16 %v1168, %v1167
  %v1184 = vpack.c.b16 %v1170, %v1169
  %v1185 = vpack.c.b16 %v1172, %v1171
  %v1186 = vpack.c.b16 %v1174, %v1173
  %v1187 = vpack.c.b16 %v1176, %v1175
  %v1188 = vpack.c.b16 %v1178, %v1177
  %v1189 = vpack.c.b16 %v1180, %v1179
  %v1190 = vpack.c.b16 %v1182, %v1181
  %1199 = vmatpush.bf16.msra.mxu0 %v1190
  %1200 = vmatpush.bf16.msra.mxu0 %v1189
  %1201 = vmatpush.bf16.msra.mxu0 %v1188
  %1202 = vmatpush.bf16.msra.mxu0 %v1187
  %1203 = vmatpush.bf16.msra.mxu0 %v1186
  %1204 = vmatpush.bf16.msra.mxu0 %v1185
  %1205 = vmatpush.bf16.msra.mxu0 %v1184
  %1206 = vmatpush.bf16.msra.mxu0 %v1183
  %1207 = vmatmul.bf16.gmra.mxu0 %v917
  %v1208 = vpop.f32.mrf.mxu0
  %v1209 = vpop.f32.mrf.mxu0
  %v1210 = vadd.f32 0.0, %v1209
  %1211 = vmatmul.bf16.gmra.mxu0 %v918
  %v1212 = vpop.f32.mrf.mxu0
  %v1213 = vadd.f32 0.0, %v1212
  %v1214 = vpop.f32.mrf.mxu0
  %v1215 = vadd.f32 0.0, %v1214
  %1216 = vmatmul.bf16.gmra.mxu0 %v919
  %v1217 = vpop.f32.mrf.mxu0
  %v1218 = vadd.f32 0.0, %v1217
  %v1219 = vpop.f32.mrf.mxu0
  %v1220 = vadd.f32 0.0, %v1219
  %1221 = vmatmul.bf16.gmra.mxu0 %v920
  %v1222 = vpop.f32.mrf.mxu0
  %v1223 = vadd.f32 0.0, %v1222
  %v1224 = vpop.f32.mrf.mxu0
  %1225 = vdwg.mxu0
  %v1226 = vld [vmem:[%s10] sm:$0xff]
  %v1227 = vld [vmem:[%s10 + $0x8] sm:$0xff]
  %v1231 = vrot.slane %v1210, 1
  %v1232 = vrot.slane %v1213, 1
  %v1233 = vsel %vm682, %v1231, %v1232
  %v1234 = vrot.slane %v1215, 1
  %v1235 = vsel %vm682, %v1232, %v1234
  %v1238 = vadd.f32 %v1226, %v1233
  %v1239 = vadd.f32 %v1227, %v1235
  %1240 = vst [vmem:[%s10] sm:$0xff] %v1238
  %1241 = vst [vmem:[%s10 + $0x8] sm:$0xff] %v1239
  %v1242 = vld [vmem:[%s10 + $0x10] sm:$0xff]
  %v1243 = vld [vmem:[%s10 + $0x18] sm:$0xff]
  %v1247 = vrot.slane %v1218, 1
  %v1248 = vrot.slane %v1220, 1
  %v1249 = vsel %vm682, %v1247, %v1248
  %v1250 = vrot.slane %v1223, 1
  %v1251 = vsel %vm682, %v1248, %v1250
  %v1254 = vadd.f32 %v1242, %v1249
  %v1255 = vadd.f32 %v1243, %v1251
  %1256 = vst [vmem:[%s10 + $0x10] sm:$0xff] %v1254
  %1257 = vst [vmem:[%s10 + $0x18] sm:$0xff] %v1255
  %v1258 = vld [vmem:[%s10] sm:$0xff]
  %v1259 = vld [vmem:[%s10 + $0x8] sm:$0xff]
  %v1260 = vld [vmem:[%s10 + $0x10] sm:$0xff]
  %v1261 = vld [vmem:[%s10 + $0x18] sm:$0xff]
  %v1262 = vld [vmem:[%s9] sm:$0xff]
  %v1263 = vld [vmem:[%s9 + $0x8] sm:$0xff]
  %v1264 = vld [vmem:[%s9 + $0x10] sm:$0xff]
  %v1265 = vld [vmem:[%s9 + $0x18] sm:$0xff]
  %v1266 = vld [vmem:[%s9 + $0x20] sm:$0xff]
  %v1267 = vld [vmem:[%s9 + $0x28] sm:$0xff]
  %v1268 = vld [vmem:[%s9 + $0x30] sm:$0xff]
  %v1269 = vld [vmem:[%s9 + $0x38] sm:$0xff]
  %v1270 = vld [vmem:[%s9 + $0x40] sm:$0xff]
  %v1271 = vld [vmem:[%s9 + $0x48] sm:$0xff]
  %v1272 = vld [vmem:[%s9 + $0x50] sm:$0xff]
  %v1273 = vld [vmem:[%s9 + $0x58] sm:$0xff]
  %v1274 = vld [vmem:[%s9 + $0x60] sm:$0xff]
  %v1275 = vld [vmem:[%s9 + $0x68] sm:$0xff]
  %v1276 = vld [vmem:[%s9 + $0x70] sm:$0xff]
  %v1277 = vld [vmem:[%s9 + $0x78] sm:$0xff]
  %1278 = vmatpush.msra.mxu0 %v1277
  %1279 = vmatpush.msra.mxu0 %v1276
  %1280 = vmatpush.msra.mxu0 %v1275
  %1281 = vmatpush.msra.mxu0 %v1274
  %1282 = vmatpush.msra.mxu0 %v1273
  %1283 = vmatpush.msra.mxu0 %v1272
  %1284 = vmatpush.msra.mxu0 %v1271
  %1285 = vmatpush.msra.mxu0 %v1270
  %1286 = vmatpush.msra.mxu0 %v1269
  %1287 = vmatpush.msra.mxu0 %v1268
  %1288 = vmatpush.msra.mxu0 %v1267
  %1289 = vmatpush.msra.mxu0 %v1266
  %1290 = vmatpush.msra.mxu0 %v1265
  %1291 = vmatpush.msra.mxu0 %v1264
  %1292 = vmatpush.msra.mxu0 %v1263
  %1293 = vmatpush.msra.mxu0 %v1262
  %1294 = vmatmul.f32.gmra.mxu0 %v1258
  %v1295 = vpop.f32.mrf.mxu0
  %v1296 = vadd.f32 0.0, %v1295
  %1297 = vmatmul.f32.gmra.mxu0 %v1259
  %v1298 = vpop.f32.mrf.mxu0
  %v1299 = vadd.f32 0.0, %v1298
  %1300 = vmatmul.f32.gmra.mxu0 %v1260
  %v1301 = vpop.f32.mrf.mxu0
  %v1302 = vadd.f32 0.0, %v1301
  %1303 = vmatmul.f32.gmra.mxu0 %v1261
  %v1304 = vpop.f32.mrf.mxu0
  %v1305 = vadd.f32 0.0, %v1304
  %1306 = vdwg.mxu0
  %v1307 = vadd.f32 %v1296, %v1299
  %v1308 = vadd.f32 %v1307, %v1302
  %v1309 = vadd.f32 %v1308, %v1305
  %v1310 = vrot.slane %v1309, 4
  %v1311 = vadd.f32 %v1309, %v1310
  %v1312 = vrot.slane %v1311, 2
  %v1313 = vadd.f32 %v1311, %v1312
  %v1314 = vrot.slane %v1313, 1
  %v1315 = vadd.f32 %v1313, %v1314
  %v1316 = vmul.f32 %v1315, %v774
  %v1317 = vsub.f32 %v1258, %v1316
  %v1318 = vsub.f32 %v1259, %v1316
  %v1319 = vsub.f32 %v1260, %v1316
  %v1320 = vsub.f32 %v1261, %v1316
  %v1321 = vmul.f32 %v1317, %v1317
  %v1322 = vmul.f32 %v1318, %v1318
  %v1323 = vmul.f32 %v1319, %v1319
  %v1324 = vmul.f32 %v1320, %v1320
  %1325 = vmatpush.msra.mxu0 %v1277
  %1326 = vmatpush.msra.mxu0 %v1276
  %1327 = vmatpush.msra.mxu0 %v1275
  %1328 = vmatpush.msra.mxu0 %v1274
  %1329 = vmatpush.msra.mxu0 %v1273
  %1330 = vmatpush.msra.mxu0 %v1272
  %1331 = vmatpush.msra.mxu0 %v1271
  %1332 = vmatpush.msra.mxu0 %v1270
  %1333 = vmatpush.msra.mxu0 %v1269
  %1334 = vmatpush.msra.mxu0 %v1268
  %1335 = vmatpush.msra.mxu0 %v1267
  %1336 = vmatpush.msra.mxu0 %v1266
  %1337 = vmatpush.msra.mxu0 %v1265
  %1338 = vmatpush.msra.mxu0 %v1264
  %1339 = vmatpush.msra.mxu0 %v1263
  %1340 = vmatpush.msra.mxu0 %v1262
  %1341 = vmatmul.f32.gmra.mxu0 %v1321
  %v1342 = vpop.f32.mrf.mxu0
  %v1343 = vadd.f32 0.0, %v1342
  %1344 = vmatmul.f32.gmra.mxu0 %v1322
  %v1345 = vpop.f32.mrf.mxu0
  %v1346 = vadd.f32 0.0, %v1345
  %1347 = vmatmul.f32.gmra.mxu0 %v1323
  %v1348 = vpop.f32.mrf.mxu0
  %v1349 = vadd.f32 0.0, %v1348
  %1350 = vmatmul.f32.gmra.mxu0 %v1324
  %v1351 = vpop.f32.mrf.mxu0
  %v1352 = vadd.f32 0.0, %v1351
  %1353 = vdwg.mxu0
  %v1354 = vadd.f32 %v1343, %v1346
  %v1355 = vadd.f32 %v1354, %v1349
  %v1356 = vadd.f32 %v1355, %v1352
  %v1357 = vrot.slane %v1356, 4
  %v1358 = vadd.f32 %v1356, %v1357
  %v1359 = vrot.slane %v1358, 2
  %v1360 = vadd.f32 %v1358, %v1359
  %v1361 = vrot.slane %v1360, 1
  %v1362 = vadd.f32 %v1360, %v1361
  %v1363 = vmul.f32 %v1362, %v774
  %v1364 = vld [vmem:[%s7] sm:$0x1]
  %v1365 = vadd.f32 %v1363, 1e-05
  %v1366 = vrsqrt.pop %v1365
  %v1367 = vmul.f32 %v1366, %v1365
  %v1368 = vmul.f32 %v1367, %v1366
  %v1369 = vmul.f32 0.5, %v1368
  %v1370 = vsub.f32 1.5, %v1369
  %v1371 = vmul.f32 %v1366, %v1370
  %vm1372 = vweird.f32 %v1365
  %vm1373 = vweird.f32 %v1366
  %vm1374 = vmor %vm1372, %vm1373
  %v1375 = vsel %vm1374, %v1366, %v1371
  %v1376 = vmul.f32 %v1364, %v1375
  %v1377 = vld [vmem:[%s8] sm:$0x1]
  %v1378 = vmul.f32 %v1316, %v1376
  %v1379 = vsub.f32 %v1377, %v1378
  %v1381 = vperm.slane %v1376, 0
  %v1383 = vmul.f32 %v1258, %v1381
  %v1384 = vmul.f32 %v1259, %v1381
  %v1385 = vmul.f32 %v1260, %v1381
  %v1386 = vmul.f32 %v1261, %v1381
  %v1388 = vperm.slane %v1379, 0
  %v1390 = vadd.f32 %v1383, %v1388
  %v1391 = vadd.f32 %v1384, %v1388
  %v1392 = vadd.f32 %v1385, %v1388
  %v1393 = vadd.f32 %v1386, %v1388
  %v1394 = vmax.f32 %v1390, 0.0
  %v1395 = vmax.f32 %v1391, 0.0
  %v1396 = vmax.f32 %v1392, 0.0
  %v1397 = vmax.f32 %v1393, 0.0
  %1398 = vst [vmem:[%s10] sm:$0xff] %v1394
  %1399 = vst [vmem:[%s10 + $0x8] sm:$0xff] %v1395
  %1400 = vst [vmem:[%s10 + $0x10] sm:$0xff] %v1396
  %1401 = vst [vmem:[%s10 + $0x18] sm:$0xff] %v1397
  // Predicated region
  $region42: #{cplx_up_forward.3} parent=0 // pred_check
    _
  $region43: #{cplx_up_forward.3} parent=0 // pred_check_branch
    %1403 = sbr.rel (0) target = $region45
  $region44: #{cplx_up_forward.3} parent=0 // pred_region
    _
  $region45: #{cplx_up_forward.3} parent=0 // pred_fallthru
    _
  // Predicated region
  $region46: #{cplx_up_forward.3} parent=0 // pred_check
    _
  $region47: #{cplx_up_forward.3} parent=0 // pred_check_branch
    %1405 = sbr.rel (0) target = $region49
  $region48: #{cplx_up_forward.3} parent=0 // pred_region
    _
  $region49: #{cplx_up_forward.3} parent=0 // pred_fallthru
    _

// kernel: custom-call.4
$region0: #{custom-call.4}
  %s0 = inlined_call_operand.vmem [shape: f32[2,4,16,16], index: 0, kind: input, shape index: {}]
  %s1 = inlined_call_operand.vmem [shape: f32[2,4,16,16], index: 1, kind: input, shape index: {}]
  %s2 = inlined_call_operand.vmem [shape: c64[2,4,16,16], index: 2, kind: output, shape index: {}]
  %s3 = scalar_lea.vmem %s2, 128
  %v4 = vld [vmem:[%s0] sm:$0xff]
  %5 = vst [vmem:[%s2] sm:$0xff] %v4
  %s6 = scalar_lea.vmem %s2, 8
  %s7 = scalar_lea.vmem %s0, 8
  %v8 = vld [vmem:[%s7] sm:$0xff]
  %9 = vst [vmem:[%s6] sm:$0xff] %v8
  %s10 = scalar_lea.vmem %s2, 16
  %s11 = scalar_lea.vmem %s0, 16
  %v12 = vld [vmem:[%s11] sm:$0xff]
  %13 = vst [vmem:[%s10] sm:$0xff] %v12
  %s14 = scalar_lea.vmem %s2, 24
  %s15 = scalar_lea.vmem %s0, 24
  %v16 = vld [vmem:[%s15] sm:$0xff]
  %17 = vst [vmem:[%s14] sm:$0xff] %v16
  %s18 = scalar_lea.vmem %s2, 32
  %s19 = scalar_lea.vmem %s0, 32
  %v20 = vld [vmem:[%s19] sm:$0xff]
  %21 = vst [vmem:[%s18] sm:$0xff] %v20
  %s22 = scalar_lea.vmem %s2, 40
  %s23 = scalar_lea.vmem %s0, 40
  %v24 = vld [vmem:[%s23] sm:$0xff]
  %25 = vst [vmem:[%s22] sm:$0xff] %v24
  %s26 = scalar_lea.vmem %s2, 48
  %s27 = scalar_lea.vmem %s0, 48
  %v28 = vld [vmem:[%s27] sm:$0xff]
  %29 = vst [vmem:[%s26] sm:$0xff] %v28
  %s30 = scalar_lea.vmem %s2, 56
  %s31 = scalar_lea.vmem %s0, 56
  %v32 = vld [vmem:[%s31] sm:$0xff]
  %33 = vst [vmem:[%s30] sm:$0xff] %v32
  %s34 = scalar_lea.vmem %s2, 64
  %s35 = scalar_lea.vmem %s0, 64
  %v36 = vld [vmem:[%s35] sm:$0xff]
  %37 = vst [vmem:[%s34] sm:$0xff] %v36
  %s38 = scalar_lea.vmem %s2, 72
  %s39 = scalar_lea.vmem %s0, 72
  %v40 = vld [vmem:[%s39] sm:$0xff]
  %41 = vst [vmem:[%s38] sm:$0xff] %v40
  %s42 = scalar_lea.vmem %s2, 80
  %s43 = scalar_lea.vmem %s0, 80
  %v44 = vld [vmem:[%s43] sm:$0xff]
  %45 = vst [vmem:[%s42] sm:$0xff] %v44
  %s46 = scalar_lea.vmem %s2, 88
  %s47 = scalar_lea.vmem %s0, 88
  %v48 = vld [vmem:[%s47] sm:$0xff]
  %49 = vst [vmem:[%s46] sm:$0xff] %v48
  %s50 = scalar_lea.vmem %s2, 96
  %s51 = scalar_lea.vmem %s0, 96
  %v52 = vld [vmem:[%s51] sm:$0xff]
  %53 = vst [vmem:[%s50] sm:$0xff] %v52
  %s54 = scalar_lea.vmem %s2, 104
  %s55 = scalar_lea.vmem %s0, 104
  %v56 = vld [vmem:[%s55] sm:$0xff]
  %57 = vst [vmem:[%s54] sm:$0xff] %v56
  %s58 = scalar_lea.vmem %s2, 112
  %s59 = scalar_lea.vmem %s0, 112
  %v60 = vld [vmem:[%s59] sm:$0xff]
  %61 = vst [vmem:[%s58] sm:$0xff] %v60
  %s62 = scalar_lea.vmem %s2, 120
  %s63 = scalar_lea.vmem %s0, 120
  %v64 = vld [vmem:[%s63] sm:$0xff]
  %65 = vst [vmem:[%s62] sm:$0xff] %v64
  %v66 = vld [vmem:[%s1] sm:$0xff]
  %67 = vst [vmem:[%s3] sm:$0xff] %v66
  %s68 = scalar_lea.vmem %s3, 8
  %s69 = scalar_lea.vmem %s1, 8
  %v70 = vld [vmem:[%s69] sm:$0xff]
  %71 = vst [vmem:[%s68] sm:$0xff] %v70
  %s72 = scalar_lea.vmem %s3, 16
  %s73 = scalar_lea.vmem %s1, 16
  %v74 = vld [vmem:[%s73] sm:$0xff]
  %75 = vst [vmem:[%s72] sm:$0xff] %v74
  %s76 = scalar_lea.vmem %s3, 24
  %s77 = scalar_lea.vmem %s1, 24
  %v78 = vld [vmem:[%s77] sm:$0xff]
  %79 = vst [vmem:[%s76] sm:$0xff] %v78
  %s80 = scalar_lea.vmem %s3, 32
  %s81 = scalar_lea.vmem %s1, 32
  %v82 = vld [vmem:[%s81] sm:$0xff]
  %83 = vst [vmem:[%s80] sm:$0xff] %v82
  %s84 = scalar_lea.vmem %s3, 40
  %s85 = scalar_lea.vmem %s1, 40
  %v86 = vld [vmem:[%s85] sm:$0xff]
  %87 = vst [vmem:[%s84] sm:$0xff] %v86
  %s88 = scalar_lea.vmem %s3, 48
  %s89 = scalar_lea.vmem %s1, 48
  %v90 = vld [vmem:[%s89] sm:$0xff]
  %91 = vst [vmem:[%s88] sm:$0xff] %v90
  %s92 = scalar_lea.vmem %s3, 56
  %s93 = scalar_lea.vmem %s1, 56
  %v94 = vld [vmem:[%s93] sm:$0xff]
  %95 = vst [vmem:[%s92] sm:$0xff] %v94
  %s96 = scalar_lea.vmem %s3, 64
  %s97 = scalar_lea.vmem %s1, 64
  %v98 = vld [vmem:[%s97] sm:$0xff]
  %99 = vst [vmem:[%s96] sm:$0xff] %v98
  %s100 = scalar_lea.vmem %s3, 72
  %s101 = scalar_lea.vmem %s1, 72
  %v102 = vld [vmem:[%s101] sm:$0xff]
  %103 = vst [vmem:[%s100] sm:$0xff] %v102
  %s104 = scalar_lea.vmem %s3, 80
  %s105 = scalar_lea.vmem %s1, 80
  %v106 = vld [vmem:[%s105] sm:$0xff]
  %107 = vst [vmem:[%s104] sm:$0xff] %v106
  %s108 = scalar_lea.vmem %s3, 88
  %s109 = scalar_lea.vmem %s1, 88
  %v110 = vld [vmem:[%s109] sm:$0xff]
  %111 = vst [vmem:[%s108] sm:$0xff] %v110
  %s112 = scalar_lea.vmem %s3, 96
  %s113 = scalar_lea.vmem %s1, 96
  %v114 = vld [vmem:[%s113] sm:$0xff]
  %115 = vst [vmem:[%s112] sm:$0xff] %v114
  %s116 = scalar_lea.vmem %s3, 104
  %s117 = scalar_lea.vmem %s1, 104
  %v118 = vld [vmem:[%s117] sm:$0xff]
  %119 = vst [vmem:[%s116] sm:$0xff] %v118
  %s120 = scalar_lea.vmem %s3, 112
  %s121 = scalar_lea.vmem %s1, 112
  %v122 = vld [vmem:[%s121] sm:$0xff]
  %123 = vst [vmem:[%s120] sm:$0xff] %v122
  %s124 = scalar_lea.vmem %s3, 120
  %s125 = scalar_lea.vmem %s1, 120
  %v126 = vld [vmem:[%s125] sm:$0xff]
  %127 = vst [vmem:[%s124] sm:$0xff] %v126

</llo_original>
